<compile_context>
chip_gen: v7x
topology: tpu7x:2x2x1
jax: 0.10.0
libtpu: 0.0.40
codegen_flags: <defaults>
</compile_context>

<pallas_src>
from functools import partial

import jax
import jax.numpy as jnp
from jax.experimental import pallas as pl
from jax.experimental.pallas import tpu as pltpu  # noqa: F401  (TPU backend)

NUM_HEADS = 4
DIM_INP = 32
DIM_OUT = 16
SEQ = 8
BATCH = 2
LN_EPS = 1e-5


def _mha_kernel(x_ref, bias_ref, wqkv_ref, wo_ref, consts_ref, out_ref, *,
                num_heads, dim_out, batch, seq):
    H, Do, B, S = num_heads, dim_out, batch, seq

    # Fused Q/K/V projection for all heads & batches; scale + biases are
    # already folded into wqkv (last row of wqkv pairs with x's ones column).
    qkv = jnp.dot(x_ref[...], wqkv_ref[...],
                  preferred_element_type=jnp.float32)            # [B*S, 3*H*Do]

    bo = consts_ref[0:1, :]                                      # [1, Di]
    gamma = consts_ref[1:2, :]                                   # [1, Di]
    beta = consts_ref[2:3, :]                                    # [1, Di]

    # Per-batch attention; B and H are tiny static loops.
    for b in range(B):
        qkv_b = qkv[b * S:(b + 1) * S, :]                        # [S, 3*H*Do]
        bias_b = bias_ref[b:b + 1, :]                            # [1, S] additive mask

        y_b = None
        for h in range(H):
            q = qkv_b[:, h * Do:(h + 1) * Do]                    # [S, Do] (pre-scaled)
            k = qkv_b[:, (H + h) * Do:(H + h + 1) * Do]          # [S, Do]
            v = qkv_b[:, (2 * H + h) * Do:(2 * H + h + 1) * Do]  # [S, Do]

            # Contract last dims directly (no explicit transpose).
            scores = jax.lax.dot_general(
                q, k, dimension_numbers=(((1,), (1,)), ((), ())),
                preferred_element_type=jnp.float32) + bias_b     # [S, S]

            scores = scores - jnp.max(scores, axis=-1, keepdims=True)
            p = jnp.exp(scores)
            attn = p / jnp.sum(p, axis=-1, keepdims=True)        # exact f32 divide

            ctx_h = jnp.dot(attn, v,
                            preferred_element_type=jnp.float32)  # [S, Do]
            # Per-head output projection (sublane-aligned row slice of wo).
            contrib = jnp.dot(ctx_h, wo_ref[h * Do:(h + 1) * Do, :],
                              preferred_element_type=jnp.float32)  # [S, Di]
            y_b = contrib if y_b is None else y_b + contrib

        y_b = y_b + bo

        # LayerNorm over the feature axis: var = E[y^2] - mu^2 so both
        # cross-lane reductions are independent.
        mu = jnp.mean(y_b, axis=-1, keepdims=True)
        msq = jnp.mean(y_b * y_b, axis=-1, keepdims=True)
        var = msq - mu * mu
        yn = (y_b - mu) * jax.lax.rsqrt(var + LN_EPS)
        out_ref[b * S:(b + 1) * S, :] = (yn * gamma + beta).astype(out_ref.dtype)


def multi_head_attention(x, mask, params):
    B, S, Di = x.shape
    H, _, Do = params["wq"].shape
    scale = 1.0 / jnp.sqrt(jnp.float32(Do))

    # ---- wrapper-side (XLA) layout prep ----
    def heads_to_cols(w):            # [H, Di, Do] -> [Di, H*Do]   (head-major columns)
        return jnp.transpose(w, (1, 0, 2)).reshape(w.shape[1], H * Do)

    def bias_to_cols(b):             # [H, 1, Do] -> [1, H*Do]
        return jnp.transpose(b, (1, 0, 2)).reshape(1, H * Do)

    # Softmax scale folded into the Q weights/bias.
    wqkv = jnp.concatenate([heads_to_cols(params["wq"]) * scale,
                            heads_to_cols(params["wk"]),
                            heads_to_cols(params["wv"])], axis=1)       # [Di, 3*H*Do]
    bqkv = jnp.concatenate([bias_to_cols(params["bq"]) * scale,
                            bias_to_cols(params["bk"]),
                            bias_to_cols(params["bv"])], axis=1)        # [1, 3*H*Do]
    # Fold the QKV biases into the matmul via an augmented ones column.
    wqkv_aug = jnp.concatenate([wqkv, bqkv], axis=0)                    # [Di+1, 3*H*Do]

    wo_cat = params["wo"].reshape(H * Do, Di)                           # [H*Do, Di]

    # bo / gamma / beta packed into a single small operand.
    consts = jnp.concatenate([params["bo"], params["gamma"], params["beta"]],
                             axis=0)                                    # [3, Di]

    # Additive mask bias, flattened to 2-D (computed once, outside the kernel).
    mask_bias = jnp.where(mask.reshape(B, S) > 0.5,
                          jnp.float32(-1e9), jnp.float32(0.0))          # [B, S]

    x_aug = jnp.concatenate([x.reshape(B * S, Di),
                             jnp.ones((B * S, 1), jnp.float32)], axis=1)  # [B*S, Di+1]

    kernel = partial(_mha_kernel, num_heads=H, dim_out=Do, batch=B, seq=S)
    out = pl.pallas_call(
        kernel,
        out_shape=jax.ShapeDtypeStruct((B * S, Di), jnp.float32),
        # No grid: the whole problem (~tens of KB) is a single VMEM-resident
        # invocation; every input/output is a full-array block.
    )(x_aug, mask_bias, wqkv_aug, wo_cat, consts)
    return out.reshape(B, S, Di)


def _init_params(key, num_heads, dim_inp, dim_out):
    ks = jax.random.split(key, 8)
    s = 0.05
    return {
        # per-head projection weights stored as [H, in, out] (JAX layout: y = x @ W + b)
        "wq": s * jax.random.normal(ks[0], (num_heads, dim_inp, dim_out), jnp.float32),
        "bq": s * jax.random.normal(ks[1], (num_heads, 1, dim_out), jnp.float32),
        "wk": s * jax.random.normal(ks[2], (num_heads, dim_inp, dim_out), jnp.float32),
        "bk": s * jax.random.normal(ks[3], (num_heads, 1, dim_out), jnp.float32),
        "wv": s * jax.random.normal(ks[4], (num_heads, dim_inp, dim_out), jnp.float32),
        "bv": s * jax.random.normal(ks[5], (num_heads, 1, dim_out), jnp.float32),
        # output Linear(dim_out*H -> dim_inp), split per head: [H, dim_out, dim_inp]
        "wo": s * jax.random.normal(ks[6], (num_heads, dim_out, dim_inp), jnp.float32),
        "bo": s * jax.random.normal(ks[7], (1, dim_inp), jnp.float32),
        # LayerNorm affine params (PyTorch default init: ones / zeros)
        "gamma": jnp.ones((1, dim_inp), jnp.float32),
        "beta": jnp.zeros((1, dim_inp), jnp.float32),
    }


def _reference(x, mask, params):
    """Pure-JAX reference matching the PyTorch forward."""
    ctxs = []
    H = params["wq"].shape[0]
    Do = params["wq"].shape[2]
    for h in range(H):
        q = x @ params["wq"][h] + params["bq"][h]
        k = x @ params["wk"][h] + params["bk"][h]
        v = x @ params["wv"][h] + params["bv"][h]
        scores = jnp.einsum("bqd,bkd->bqk", q, k) / jnp.sqrt(jnp.float32(Do))
        scores = jnp.where(mask > 0.5, -1e9, scores)
        attn = jax.nn.softmax(scores, axis=-1)
        ctxs.append(jnp.einsum("bqk,bkd->bqd", attn, v))
    cat = jnp.concatenate(ctxs, axis=-1)                       # [B, S, H*Do]
    wo_cat = params["wo"].reshape(H * Do, -1)
    y = cat @ wo_cat + params["bo"][0]
    mu = y.mean(-1, keepdims=True)
    var = ((y - mu) ** 2).mean(-1, keepdims=True)
    return (y - mu) * jax.lax.rsqrt(var + LN_EPS) * params["gamma"][0] + params["beta"][0]


if __name__ == "__main__":
    key = jax.random.PRNGKey(0)
    kx, kp = jax.random.split(key)

    x = jax.random.normal(kx, (BATCH, SEQ, DIM_INP), jnp.float32)
    # deterministic padding mask: batch 0 has no padding, batch 1 masks last 2 keys
    lengths = jnp.array([SEQ, SEQ - 2], jnp.int32)
    positions = jnp.arange(SEQ)[None, None, :]                 # [1, 1, S]
    mask = (positions >= lengths[:, None, None]).astype(jnp.float32)  # [B, 1, S]

    params = _init_params(kp, NUM_HEADS, DIM_INP, DIM_OUT)

    out = multi_head_attention(x, mask, params)
    out = jax.block_until_ready(out)

    ref = _reference(x, mask, params)
    assert out.shape == (BATCH, SEQ, DIM_INP)
    # Everything in the kernel is f32 (exact softmax divide), so this is tight.
    assert jnp.allclose(out, ref, rtol=1e-3, atol=1e-3), "mismatch vs pure-JAX reference"

    print("KERNEL_OK")
</pallas_src>

<mosaic_0001>
module attributes {stable_mosaic.version = 11 : i64} {
  func.func @_mha_kernel(%arg0: memref<16x33xf32, #tpu.memory_space<vmem>>, %arg1: memref<2x8xf32, #tpu.memory_space<vmem>>, %arg2: memref<33x192xf32, #tpu.memory_space<vmem>>, %arg3: memref<64x32xf32, #tpu.memory_space<vmem>>, %arg4: memref<3x32xf32, #tpu.memory_space<vmem>>, %arg5: memref<16x32xf32, #tpu.memory_space<vmem>>) attributes {dimension_semantics = [], scalar_prefetch = 0 : i64, scratch_operands = 0 : i64, tpu.core_type = #tpu.core_type<tc>} {
    %c0 = arith.constant 0 : index
    %c0_0 = arith.constant 0 : index
    %0 = vector.load %arg0[%c0, %c0_0] : memref<16x33xf32, #tpu.memory_space<vmem>>, vector<16x33xf32>
    %c0_1 = arith.constant 0 : index
    %c0_2 = arith.constant 0 : index
    %1 = vector.load %arg2[%c0_1, %c0_2] : memref<33x192xf32, #tpu.memory_space<vmem>>, vector<33x192xf32>
    %cst = arith.constant dense<0.000000e+00> : vector<16x192xf32>
    %2 = tpu.matmul %0, %1, %cst {dimension_numbers = #tpu.dot_dimension_numbers<[1], [0], [0], [1], [0, 0, 1, 1], [], []>} : vector<16x33xf32>, vector<33x192xf32>, vector<16x192xf32> -> vector<16x192xf32>
    %c0_3 = arith.constant 0 : index
    %c0_4 = arith.constant 0 : index
    %3 = vector.load %arg4[%c0_3, %c0_4] : memref<3x32xf32, #tpu.memory_space<vmem>>, vector<1x32xf32>
    %c1 = arith.constant 1 : index
    %c0_5 = arith.constant 0 : index
    %4 = vector.load %arg4[%c1, %c0_5] : memref<3x32xf32, #tpu.memory_space<vmem>>, vector<1x32xf32>
    %c2 = arith.constant 2 : index
    %c0_6 = arith.constant 0 : index
    %5 = vector.load %arg4[%c2, %c0_6] : memref<3x32xf32, #tpu.memory_space<vmem>>, vector<1x32xf32>
    %6 = vector.extract_strided_slice %2 {offsets = [0, 0], sizes = [8, 192], strides = [1, 1]} : vector<16x192xf32> to vector<8x192xf32>
    %c0_7 = arith.constant 0 : index
    %c0_8 = arith.constant 0 : index
    %7 = vector.load %arg1[%c0_7, %c0_8] : memref<2x8xf32, #tpu.memory_space<vmem>>, vector<1x8xf32>
    %8 = vector.extract_strided_slice %6 {offsets = [0, 0], sizes = [8, 16], strides = [1, 1]} : vector<8x192xf32> to vector<8x16xf32>
    %9 = vector.extract_strided_slice %6 {offsets = [0, 64], sizes = [8, 16], strides = [1, 1]} : vector<8x192xf32> to vector<8x16xf32>
    %10 = vector.extract_strided_slice %6 {offsets = [0, 128], sizes = [8, 16], strides = [1, 1]} : vector<8x192xf32> to vector<8x16xf32>
    %cst_9 = arith.constant dense<0.000000e+00> : vector<8x8xf32>
    %11 = tpu.matmul %8, %9, %cst_9 {dimension_numbers = #tpu.dot_dimension_numbers<[1], [1], [0], [0], [0, 0, 1, 0], [], []>} : vector<8x16xf32>, vector<8x16xf32>, vector<8x8xf32> -> vector<8x8xf32>
    %12 = vector.broadcast %7 : vector<1x8xf32> to vector<8x8xf32>
    %13 = arith.addf %11, %12 : vector<8x8xf32>
    %cst_10 = arith.constant dense<0xFF800000> : vector<8xf32>
    %14 = vector.multi_reduction <maximumf>, %13, %cst_10 [1] : vector<8x8xf32> to vector<8xf32>
    %15 = vector.shape_cast %14 : vector<8xf32> to vector<8x1xf32>
    %16 = vector.broadcast %15 : vector<8x1xf32> to vector<8x8xf32>
    %17 = arith.subf %13, %16 : vector<8x8xf32>
    %18 = math.exp %17 : vector<8x8xf32>
    %cst_11 = arith.constant dense<0.000000e+00> : vector<8xf32>
    %19 = vector.multi_reduction <add>, %18, %cst_11 [1] : vector<8x8xf32> to vector<8xf32>
    %20 = vector.shape_cast %19 : vector<8xf32> to vector<8x1xf32>
    %21 = vector.broadcast %20 : vector<8x1xf32> to vector<8x8xf32>
    %22 = arith.divf %18, %21 : vector<8x8xf32>
    %cst_12 = arith.constant dense<0.000000e+00> : vector<8x16xf32>
    %23 = tpu.matmul %22, %10, %cst_12 {dimension_numbers = #tpu.dot_dimension_numbers<[1], [0], [0], [1], [0, 0, 1, 1], [], []>} : vector<8x8xf32>, vector<8x16xf32>, vector<8x16xf32> -> vector<8x16xf32>
    %c0_13 = arith.constant 0 : index
    %c0_14 = arith.constant 0 : index
    %24 = vector.load %arg3[%c0_13, %c0_14] : memref<64x32xf32, #tpu.memory_space<vmem>>, vector<16x32xf32>
    %cst_15 = arith.constant dense<0.000000e+00> : vector<8x32xf32>
    %25 = tpu.matmul %23, %24, %cst_15 {dimension_numbers = #tpu.dot_dimension_numbers<[1], [0], [0], [1], [0, 0, 1, 1], [], []>} : vector<8x16xf32>, vector<16x32xf32>, vector<8x32xf32> -> vector<8x32xf32>
    %26 = vector.extract_strided_slice %6 {offsets = [0, 16], sizes = [8, 16], strides = [1, 1]} : vector<8x192xf32> to vector<8x16xf32>
    %27 = vector.extract_strided_slice %6 {offsets = [0, 80], sizes = [8, 16], strides = [1, 1]} : vector<8x192xf32> to vector<8x16xf32>
    %28 = vector.extract_strided_slice %6 {offsets = [0, 144], sizes = [8, 16], strides = [1, 1]} : vector<8x192xf32> to vector<8x16xf32>
    %cst_16 = arith.constant dense<0.000000e+00> : vector<8x8xf32>
    %29 = tpu.matmul %26, %27, %cst_16 {dimension_numbers = #tpu.dot_dimension_numbers<[1], [1], [0], [0], [0, 0, 1, 0], [], []>} : vector<8x16xf32>, vector<8x16xf32>, vector<8x8xf32> -> vector<8x8xf32>
    %30 = vector.broadcast %7 : vector<1x8xf32> to vector<8x8xf32>
    %31 = arith.addf %29, %30 : vector<8x8xf32>
    %cst_17 = arith.constant dense<0xFF800000> : vector<8xf32>
    %32 = vector.multi_reduction <maximumf>, %31, %cst_17 [1] : vector<8x8xf32> to vector<8xf32>
    %33 = vector.shape_cast %32 : vector<8xf32> to vector<8x1xf32>
    %34 = vector.broadcast %33 : vector<8x1xf32> to vector<8x8xf32>
    %35 = arith.subf %31, %34 : vector<8x8xf32>
    %36 = math.exp %35 : vector<8x8xf32>
    %cst_18 = arith.constant dense<0.000000e+00> : vector<8xf32>
    %37 = vector.multi_reduction <add>, %36, %cst_18 [1] : vector<8x8xf32> to vector<8xf32>
    %38 = vector.shape_cast %37 : vector<8xf32> to vector<8x1xf32>
    %39 = vector.broadcast %38 : vector<8x1xf32> to vector<8x8xf32>
    %40 = arith.divf %36, %39 : vector<8x8xf32>
    %cst_19 = arith.constant dense<0.000000e+00> : vector<8x16xf32>
    %41 = tpu.matmul %40, %28, %cst_19 {dimension_numbers = #tpu.dot_dimension_numbers<[1], [0], [0], [1], [0, 0, 1, 1], [], []>} : vector<8x8xf32>, vector<8x16xf32>, vector<8x16xf32> -> vector<8x16xf32>
    %c16 = arith.constant 16 : index
    %c0_20 = arith.constant 0 : index
    %42 = vector.load %arg3[%c16, %c0_20] : memref<64x32xf32, #tpu.memory_space<vmem>>, vector<16x32xf32>
    %cst_21 = arith.constant dense<0.000000e+00> : vector<8x32xf32>
    %43 = tpu.matmul %41, %42, %cst_21 {dimension_numbers = #tpu.dot_dimension_numbers<[1], [0], [0], [1], [0, 0, 1, 1], [], []>} : vector<8x16xf32>, vector<16x32xf32>, vector<8x32xf32> -> vector<8x32xf32>
    %44 = arith.addf %25, %43 : vector<8x32xf32>
    %45 = vector.extract_strided_slice %6 {offsets = [0, 32], sizes = [8, 16], strides = [1, 1]} : vector<8x192xf32> to vector<8x16xf32>
    %46 = vector.extract_strided_slice %6 {offsets = [0, 96], sizes = [8, 16], strides = [1, 1]} : vector<8x192xf32> to vector<8x16xf32>
    %47 = vector.extract_strided_slice %6 {offsets = [0, 160], sizes = [8, 16], strides = [1, 1]} : vector<8x192xf32> to vector<8x16xf32>
    %cst_22 = arith.constant dense<0.000000e+00> : vector<8x8xf32>
    %48 = tpu.matmul %45, %46, %cst_22 {dimension_numbers = #tpu.dot_dimension_numbers<[1], [1], [0], [0], [0, 0, 1, 0], [], []>} : vector<8x16xf32>, vector<8x16xf32>, vector<8x8xf32> -> vector<8x8xf32>
    %49 = vector.broadcast %7 : vector<1x8xf32> to vector<8x8xf32>
    %50 = arith.addf %48, %49 : vector<8x8xf32>
    %cst_23 = arith.constant dense<0xFF800000> : vector<8xf32>
    %51 = vector.multi_reduction <maximumf>, %50, %cst_23 [1] : vector<8x8xf32> to vector<8xf32>
    %52 = vector.shape_cast %51 : vector<8xf32> to vector<8x1xf32>
    %53 = vector.broadcast %52 : vector<8x1xf32> to vector<8x8xf32>
    %54 = arith.subf %50, %53 : vector<8x8xf32>
    %55 = math.exp %54 : vector<8x8xf32>
    %cst_24 = arith.constant dense<0.000000e+00> : vector<8xf32>
    %56 = vector.multi_reduction <add>, %55, %cst_24 [1] : vector<8x8xf32> to vector<8xf32>
    %57 = vector.shape_cast %56 : vector<8xf32> to vector<8x1xf32>
    %58 = vector.broadcast %57 : vector<8x1xf32> to vector<8x8xf32>
    %59 = arith.divf %55, %58 : vector<8x8xf32>
    %cst_25 = arith.constant dense<0.000000e+00> : vector<8x16xf32>
    %60 = tpu.matmul %59, %47, %cst_25 {dimension_numbers = #tpu.dot_dimension_numbers<[1], [0], [0], [1], [0, 0, 1, 1], [], []>} : vector<8x8xf32>, vector<8x16xf32>, vector<8x16xf32> -> vector<8x16xf32>
    %c32 = arith.constant 32 : index
    %c0_26 = arith.constant 0 : index
    %61 = vector.load %arg3[%c32, %c0_26] : memref<64x32xf32, #tpu.memory_space<vmem>>, vector<16x32xf32>
    %cst_27 = arith.constant dense<0.000000e+00> : vector<8x32xf32>
    %62 = tpu.matmul %60, %61, %cst_27 {dimension_numbers = #tpu.dot_dimension_numbers<[1], [0], [0], [1], [0, 0, 1, 1], [], []>} : vector<8x16xf32>, vector<16x32xf32>, vector<8x32xf32> -> vector<8x32xf32>
    %63 = arith.addf %44, %62 : vector<8x32xf32>
    %64 = vector.extract_strided_slice %6 {offsets = [0, 48], sizes = [8, 16], strides = [1, 1]} : vector<8x192xf32> to vector<8x16xf32>
    %65 = vector.extract_strided_slice %6 {offsets = [0, 112], sizes = [8, 16], strides = [1, 1]} : vector<8x192xf32> to vector<8x16xf32>
    %66 = vector.extract_strided_slice %6 {offsets = [0, 176], sizes = [8, 16], strides = [1, 1]} : vector<8x192xf32> to vector<8x16xf32>
    %cst_28 = arith.constant dense<0.000000e+00> : vector<8x8xf32>
    %67 = tpu.matmul %64, %65, %cst_28 {dimension_numbers = #tpu.dot_dimension_numbers<[1], [1], [0], [0], [0, 0, 1, 0], [], []>} : vector<8x16xf32>, vector<8x16xf32>, vector<8x8xf32> -> vector<8x8xf32>
    %68 = vector.broadcast %7 : vector<1x8xf32> to vector<8x8xf32>
    %69 = arith.addf %67, %68 : vector<8x8xf32>
    %cst_29 = arith.constant dense<0xFF800000> : vector<8xf32>
    %70 = vector.multi_reduction <maximumf>, %69, %cst_29 [1] : vector<8x8xf32> to vector<8xf32>
    %71 = vector.shape_cast %70 : vector<8xf32> to vector<8x1xf32>
    %72 = vector.broadcast %71 : vector<8x1xf32> to vector<8x8xf32>
    %73 = arith.subf %69, %72 : vector<8x8xf32>
    %74 = math.exp %73 : vector<8x8xf32>
    %cst_30 = arith.constant dense<0.000000e+00> : vector<8xf32>
    %75 = vector.multi_reduction <add>, %74, %cst_30 [1] : vector<8x8xf32> to vector<8xf32>
    %76 = vector.shape_cast %75 : vector<8xf32> to vector<8x1xf32>
    %77 = vector.broadcast %76 : vector<8x1xf32> to vector<8x8xf32>
    %78 = arith.divf %74, %77 : vector<8x8xf32>
    %cst_31 = arith.constant dense<0.000000e+00> : vector<8x16xf32>
    %79 = tpu.matmul %78, %66, %cst_31 {dimension_numbers = #tpu.dot_dimension_numbers<[1], [0], [0], [1], [0, 0, 1, 1], [], []>} : vector<8x8xf32>, vector<8x16xf32>, vector<8x16xf32> -> vector<8x16xf32>
    %c48 = arith.constant 48 : index
    %c0_32 = arith.constant 0 : index
    %80 = vector.load %arg3[%c48, %c0_32] : memref<64x32xf32, #tpu.memory_space<vmem>>, vector<16x32xf32>
    %cst_33 = arith.constant dense<0.000000e+00> : vector<8x32xf32>
    %81 = tpu.matmul %79, %80, %cst_33 {dimension_numbers = #tpu.dot_dimension_numbers<[1], [0], [0], [1], [0, 0, 1, 1], [], []>} : vector<8x16xf32>, vector<16x32xf32>, vector<8x32xf32> -> vector<8x32xf32>
    %82 = arith.addf %63, %81 : vector<8x32xf32>
    %83 = vector.broadcast %3 : vector<1x32xf32> to vector<8x32xf32>
    %84 = arith.addf %82, %83 : vector<8x32xf32>
    %cst_34 = arith.constant dense<0.000000e+00> : vector<8xf32>
    %85 = vector.multi_reduction <add>, %84, %cst_34 [1] : vector<8x32xf32> to vector<8xf32>
    %86 = vector.shape_cast %85 : vector<8xf32> to vector<8x1xf32>
    %cst_35 = arith.constant 3.200000e+01 : f32
    %87 = vector.broadcast %cst_35 : f32 to vector<8x1xf32>
    %88 = arith.divf %86, %87 : vector<8x1xf32>
    %89 = arith.mulf %84, %84 : vector<8x32xf32>
    %cst_36 = arith.constant dense<0.000000e+00> : vector<8xf32>
    %90 = vector.multi_reduction <add>, %89, %cst_36 [1] : vector<8x32xf32> to vector<8xf32>
    %91 = vector.shape_cast %90 : vector<8xf32> to vector<8x1xf32>
    %cst_37 = arith.constant 3.200000e+01 : f32
    %92 = vector.broadcast %cst_37 : f32 to vector<8x1xf32>
    %93 = arith.divf %91, %92 : vector<8x1xf32>
    %94 = arith.mulf %88, %88 : vector<8x1xf32>
    %95 = arith.subf %93, %94 : vector<8x1xf32>
    %96 = vector.broadcast %88 : vector<8x1xf32> to vector<8x32xf32>
    %97 = arith.subf %84, %96 : vector<8x32xf32>
    %cst_38 = arith.constant 9.99999974E-6 : f32
    %98 = vector.broadcast %cst_38 : f32 to vector<8x1xf32>
    %99 = arith.addf %95, %98 : vector<8x1xf32>
    %100 = math.rsqrt %99 : vector<8x1xf32>
    %101 = vector.broadcast %100 : vector<8x1xf32> to vector<8x32xf32>
    %102 = arith.mulf %97, %101 : vector<8x32xf32>
    %103 = vector.broadcast %4 : vector<1x32xf32> to vector<8x32xf32>
    %104 = arith.mulf %102, %103 : vector<8x32xf32>
    %105 = vector.broadcast %5 : vector<1x32xf32> to vector<8x32xf32>
    %106 = arith.addf %104, %105 : vector<8x32xf32>
    %c0_39 = arith.constant 0 : index
    %c0_40 = arith.constant 0 : index
    %107 = vector.load %arg5[%c0_39, %c0_40] : memref<16x32xf32, #tpu.memory_space<vmem>>, vector<8x32xf32>
    tpu.vector_store %arg5[%c0_39, %c0_40], %106 {strides = array<i32>} : memref<16x32xf32, #tpu.memory_space<vmem>>, vector<8x32xf32>,
    %108 = vector.extract_strided_slice %2 {offsets = [8, 0], sizes = [8, 192], strides = [1, 1]} : vector<16x192xf32> to vector<8x192xf32>
    %c1_41 = arith.constant 1 : index
    %c0_42 = arith.constant 0 : index
    %109 = vector.load %arg1[%c1_41, %c0_42] : memref<2x8xf32, #tpu.memory_space<vmem>>, vector<1x8xf32>
    %110 = vector.extract_strided_slice %108 {offsets = [0, 0], sizes = [8, 16], strides = [1, 1]} : vector<8x192xf32> to vector<8x16xf32>
    %111 = vector.extract_strided_slice %108 {offsets = [0, 64], sizes = [8, 16], strides = [1, 1]} : vector<8x192xf32> to vector<8x16xf32>
    %112 = vector.extract_strided_slice %108 {offsets = [0, 128], sizes = [8, 16], strides = [1, 1]} : vector<8x192xf32> to vector<8x16xf32>
    %cst_43 = arith.constant dense<0.000000e+00> : vector<8x8xf32>
    %113 = tpu.matmul %110, %111, %cst_43 {dimension_numbers = #tpu.dot_dimension_numbers<[1], [1], [0], [0], [0, 0, 1, 0], [], []>} : vector<8x16xf32>, vector<8x16xf32>, vector<8x8xf32> -> vector<8x8xf32>
    %114 = vector.broadcast %109 : vector<1x8xf32> to vector<8x8xf32>
    %115 = arith.addf %113, %114 : vector<8x8xf32>
    %cst_44 = arith.constant dense<0xFF800000> : vector<8xf32>
    %116 = vector.multi_reduction <maximumf>, %115, %cst_44 [1] : vector<8x8xf32> to vector<8xf32>
    %117 = vector.shape_cast %116 : vector<8xf32> to vector<8x1xf32>
    %118 = vector.broadcast %117 : vector<8x1xf32> to vector<8x8xf32>
    %119 = arith.subf %115, %118 : vector<8x8xf32>
    %120 = math.exp %119 : vector<8x8xf32>
    %cst_45 = arith.constant dense<0.000000e+00> : vector<8xf32>
    %121 = vector.multi_reduction <add>, %120, %cst_45 [1] : vector<8x8xf32> to vector<8xf32>
    %122 = vector.shape_cast %121 : vector<8xf32> to vector<8x1xf32>
    %123 = vector.broadcast %122 : vector<8x1xf32> to vector<8x8xf32>
    %124 = arith.divf %120, %123 : vector<8x8xf32>
    %cst_46 = arith.constant dense<0.000000e+00> : vector<8x16xf32>
    %125 = tpu.matmul %124, %112, %cst_46 {dimension_numbers = #tpu.dot_dimension_numbers<[1], [0], [0], [1], [0, 0, 1, 1], [], []>} : vector<8x8xf32>, vector<8x16xf32>, vector<8x16xf32> -> vector<8x16xf32>
    %c0_47 = arith.constant 0 : index
    %c0_48 = arith.constant 0 : index
    %126 = vector.load %arg3[%c0_47, %c0_48] : memref<64x32xf32, #tpu.memory_space<vmem>>, vector<16x32xf32>
    %cst_49 = arith.constant dense<0.000000e+00> : vector<8x32xf32>
    %127 = tpu.matmul %125, %126, %cst_49 {dimension_numbers = #tpu.dot_dimension_numbers<[1], [0], [0], [1], [0, 0, 1, 1], [], []>} : vector<8x16xf32>, vector<16x32xf32>, vector<8x32xf32> -> vector<8x32xf32>
    %128 = vector.extract_strided_slice %108 {offsets = [0, 16], sizes = [8, 16], strides = [1, 1]} : vector<8x192xf32> to vector<8x16xf32>
    %129 = vector.extract_strided_slice %108 {offsets = [0, 80], sizes = [8, 16], strides = [1, 1]} : vector<8x192xf32> to vector<8x16xf32>
    %130 = vector.extract_strided_slice %108 {offsets = [0, 144], sizes = [8, 16], strides = [1, 1]} : vector<8x192xf32> to vector<8x16xf32>
    %cst_50 = arith.constant dense<0.000000e+00> : vector<8x8xf32>
    %131 = tpu.matmul %128, %129, %cst_50 {dimension_numbers = #tpu.dot_dimension_numbers<[1], [1], [0], [0], [0, 0, 1, 0], [], []>} : vector<8x16xf32>, vector<8x16xf32>, vector<8x8xf32> -> vector<8x8xf32>
    %132 = vector.broadcast %109 : vector<1x8xf32> to vector<8x8xf32>
    %133 = arith.addf %131, %132 : vector<8x8xf32>
    %cst_51 = arith.constant dense<0xFF800000> : vector<8xf32>
    %134 = vector.multi_reduction <maximumf>, %133, %cst_51 [1] : vector<8x8xf32> to vector<8xf32>
    %135 = vector.shape_cast %134 : vector<8xf32> to vector<8x1xf32>
    %136 = vector.broadcast %135 : vector<8x1xf32> to vector<8x8xf32>
    %137 = arith.subf %133, %136 : vector<8x8xf32>
    %138 = math.exp %137 : vector<8x8xf32>
    %cst_52 = arith.constant dense<0.000000e+00> : vector<8xf32>
    %139 = vector.multi_reduction <add>, %138, %cst_52 [1] : vector<8x8xf32> to vector<8xf32>
    %140 = vector.shape_cast %139 : vector<8xf32> to vector<8x1xf32>
    %141 = vector.broadcast %140 : vector<8x1xf32> to vector<8x8xf32>
    %142 = arith.divf %138, %141 : vector<8x8xf32>
    %cst_53 = arith.constant dense<0.000000e+00> : vector<8x16xf32>
    %143 = tpu.matmul %142, %130, %cst_53 {dimension_numbers = #tpu.dot_dimension_numbers<[1], [0], [0], [1], [0, 0, 1, 1], [], []>} : vector<8x8xf32>, vector<8x16xf32>, vector<8x16xf32> -> vector<8x16xf32>
    %c16_54 = arith.constant 16 : index
    %c0_55 = arith.constant 0 : index
    %144 = vector.load %arg3[%c16_54, %c0_55] : memref<64x32xf32, #tpu.memory_space<vmem>>, vector<16x32xf32>
    %cst_56 = arith.constant dense<0.000000e+00> : vector<8x32xf32>
    %145 = tpu.matmul %143, %144, %cst_56 {dimension_numbers = #tpu.dot_dimension_numbers<[1], [0], [0], [1], [0, 0, 1, 1], [], []>} : vector<8x16xf32>, vector<16x32xf32>, vector<8x32xf32> -> vector<8x32xf32>
    %146 = arith.addf %127, %145 : vector<8x32xf32>
    %147 = vector.extract_strided_slice %108 {offsets = [0, 32], sizes = [8, 16], strides = [1, 1]} : vector<8x192xf32> to vector<8x16xf32>
    %148 = vector.extract_strided_slice %108 {offsets = [0, 96], sizes = [8, 16], strides = [1, 1]} : vector<8x192xf32> to vector<8x16xf32>
    %149 = vector.extract_strided_slice %108 {offsets = [0, 160], sizes = [8, 16], strides = [1, 1]} : vector<8x192xf32> to vector<8x16xf32>
    %cst_57 = arith.constant dense<0.000000e+00> : vector<8x8xf32>
    %150 = tpu.matmul %147, %148, %cst_57 {dimension_numbers = #tpu.dot_dimension_numbers<[1], [1], [0], [0], [0, 0, 1, 0], [], []>} : vector<8x16xf32>, vector<8x16xf32>, vector<8x8xf32> -> vector<8x8xf32>
    %151 = vector.broadcast %109 : vector<1x8xf32> to vector<8x8xf32>
    %152 = arith.addf %150, %151 : vector<8x8xf32>
    %cst_58 = arith.constant dense<0xFF800000> : vector<8xf32>
    %153 = vector.multi_reduction <maximumf>, %152, %cst_58 [1] : vector<8x8xf32> to vector<8xf32>
    %154 = vector.shape_cast %153 : vector<8xf32> to vector<8x1xf32>
    %155 = vector.broadcast %154 : vector<8x1xf32> to vector<8x8xf32>
    %156 = arith.subf %152, %155 : vector<8x8xf32>
    %157 = math.exp %156 : vector<8x8xf32>
    %cst_59 = arith.constant dense<0.000000e+00> : vector<8xf32>
    %158 = vector.multi_reduction <add>, %157, %cst_59 [1] : vector<8x8xf32> to vector<8xf32>
    %159 = vector.shape_cast %158 : vector<8xf32> to vector<8x1xf32>
    %160 = vector.broadcast %159 : vector<8x1xf32> to vector<8x8xf32>
    %161 = arith.divf %157, %160 : vector<8x8xf32>
    %cst_60 = arith.constant dense<0.000000e+00> : vector<8x16xf32>
    %162 = tpu.matmul %161, %149, %cst_60 {dimension_numbers = #tpu.dot_dimension_numbers<[1], [0], [0], [1], [0, 0, 1, 1], [], []>} : vector<8x8xf32>, vector<8x16xf32>, vector<8x16xf32> -> vector<8x16xf32>
    %c32_61 = arith.constant 32 : index
    %c0_62 = arith.constant 0 : index
    %163 = vector.load %arg3[%c32_61, %c0_62] : memref<64x32xf32, #tpu.memory_space<vmem>>, vector<16x32xf32>
    %cst_63 = arith.constant dense<0.000000e+00> : vector<8x32xf32>
    %164 = tpu.matmul %162, %163, %cst_63 {dimension_numbers = #tpu.dot_dimension_numbers<[1], [0], [0], [1], [0, 0, 1, 1], [], []>} : vector<8x16xf32>, vector<16x32xf32>, vector<8x32xf32> -> vector<8x32xf32>
    %165 = arith.addf %146, %164 : vector<8x32xf32>
    %166 = vector.extract_strided_slice %108 {offsets = [0, 48], sizes = [8, 16], strides = [1, 1]} : vector<8x192xf32> to vector<8x16xf32>
    %167 = vector.extract_strided_slice %108 {offsets = [0, 112], sizes = [8, 16], strides = [1, 1]} : vector<8x192xf32> to vector<8x16xf32>
    %168 = vector.extract_strided_slice %108 {offsets = [0, 176], sizes = [8, 16], strides = [1, 1]} : vector<8x192xf32> to vector<8x16xf32>
    %cst_64 = arith.constant dense<0.000000e+00> : vector<8x8xf32>
    %169 = tpu.matmul %166, %167, %cst_64 {dimension_numbers = #tpu.dot_dimension_numbers<[1], [1], [0], [0], [0, 0, 1, 0], [], []>} : vector<8x16xf32>, vector<8x16xf32>, vector<8x8xf32> -> vector<8x8xf32>
    %170 = vector.broadcast %109 : vector<1x8xf32> to vector<8x8xf32>
    %171 = arith.addf %169, %170 : vector<8x8xf32>
    %cst_65 = arith.constant dense<0xFF800000> : vector<8xf32>
    %172 = vector.multi_reduction <maximumf>, %171, %cst_65 [1] : vector<8x8xf32> to vector<8xf32>
    %173 = vector.shape_cast %172 : vector<8xf32> to vector<8x1xf32>
    %174 = vector.broadcast %173 : vector<8x1xf32> to vector<8x8xf32>
    %175 = arith.subf %171, %174 : vector<8x8xf32>
    %176 = math.exp %175 : vector<8x8xf32>
    %cst_66 = arith.constant dense<0.000000e+00> : vector<8xf32>
    %177 = vector.multi_reduction <add>, %176, %cst_66 [1] : vector<8x8xf32> to vector<8xf32>
    %178 = vector.shape_cast %177 : vector<8xf32> to vector<8x1xf32>
    %179 = vector.broadcast %178 : vector<8x1xf32> to vector<8x8xf32>
    %180 = arith.divf %176, %179 : vector<8x8xf32>
    %cst_67 = arith.constant dense<0.000000e+00> : vector<8x16xf32>
    %181 = tpu.matmul %180, %168, %cst_67 {dimension_numbers = #tpu.dot_dimension_numbers<[1], [0], [0], [1], [0, 0, 1, 1], [], []>} : vector<8x8xf32>, vector<8x16xf32>, vector<8x16xf32> -> vector<8x16xf32>
    %c48_68 = arith.constant 48 : index
    %c0_69 = arith.constant 0 : index
    %182 = vector.load %arg3[%c48_68, %c0_69] : memref<64x32xf32, #tpu.memory_space<vmem>>, vector<16x32xf32>
    %cst_70 = arith.constant dense<0.000000e+00> : vector<8x32xf32>
    %183 = tpu.matmul %181, %182, %cst_70 {dimension_numbers = #tpu.dot_dimension_numbers<[1], [0], [0], [1], [0, 0, 1, 1], [], []>} : vector<8x16xf32>, vector<16x32xf32>, vector<8x32xf32> -> vector<8x32xf32>
    %184 = arith.addf %165, %183 : vector<8x32xf32>
    %185 = vector.broadcast %3 : vector<1x32xf32> to vector<8x32xf32>
    %186 = arith.addf %184, %185 : vector<8x32xf32>
    %cst_71 = arith.constant dense<0.000000e+00> : vector<8xf32>
    %187 = vector.multi_reduction <add>, %186, %cst_71 [1] : vector<8x32xf32> to vector<8xf32>
    %188 = vector.shape_cast %187 : vector<8xf32> to vector<8x1xf32>
    %cst_72 = arith.constant 3.200000e+01 : f32
    %189 = vector.broadcast %cst_72 : f32 to vector<8x1xf32>
    %190 = arith.divf %188, %189 : vector<8x1xf32>
    %191 = arith.mulf %186, %186 : vector<8x32xf32>
    %cst_73 = arith.constant dense<0.000000e+00> : vector<8xf32>
    %192 = vector.multi_reduction <add>, %191, %cst_73 [1] : vector<8x32xf32> to vector<8xf32>
    %193 = vector.shape_cast %192 : vector<8xf32> to vector<8x1xf32>
    %cst_74 = arith.constant 3.200000e+01 : f32
    %194 = vector.broadcast %cst_74 : f32 to vector<8x1xf32>
    %195 = arith.divf %193, %194 : vector<8x1xf32>
    %196 = arith.mulf %190, %190 : vector<8x1xf32>
    %197 = arith.subf %195, %196 : vector<8x1xf32>
    %198 = vector.broadcast %190 : vector<8x1xf32> to vector<8x32xf32>
    %199 = arith.subf %186, %198 : vector<8x32xf32>
    %cst_75 = arith.constant 9.99999974E-6 : f32
    %200 = vector.broadcast %cst_75 : f32 to vector<8x1xf32>
    %201 = arith.addf %197, %200 : vector<8x1xf32>
    %202 = math.rsqrt %201 : vector<8x1xf32>
    %203 = vector.broadcast %202 : vector<8x1xf32> to vector<8x32xf32>
    %204 = arith.mulf %199, %203 : vector<8x32xf32>
    %205 = vector.broadcast %4 : vector<1x32xf32> to vector<8x32xf32>
    %206 = arith.mulf %204, %205 : vector<8x32xf32>
    %207 = vector.broadcast %5 : vector<1x32xf32> to vector<8x32xf32>
    %208 = arith.addf %206, %207 : vector<8x32xf32>
    %c8 = arith.constant 8 : index
    %c0_76 = arith.constant 0 : index
    %209 = vector.load %arg5[%c8, %c0_76] : memref<16x32xf32, #tpu.memory_space<vmem>>, vector<8x32xf32>
    tpu.vector_store %arg5[%c8, %c0_76], %208 {strides = array<i32>} : memref<16x32xf32, #tpu.memory_space<vmem>>, vector<8x32xf32>,
    return
  }
}

</mosaic_0001>

<llo_original>
// kernel: tpu_custom_call.1
$region0: #{tpu_custom_call.1}
  #allocation0 [shape = 'u32[]', space=smem, size = 0x4, offset = 0x4, fixed_abs, tag = 'smem constant byte address 0x4 - core index']
  #allocation1 [shape = 'u32[144,128]{1,0:T(1,128)}', space=vmem, size = 0x12000, scoped, tag = 'internal scratch']
  %s0 = inlined_call_operand.vmem [shape: f32[16,33], index: 0, kind: input, shape index: {}]
  %s1 = inlined_call_operand.vmem [shape: f32[2,8], index: 1, kind: input, shape index: {}]
  %s2 = inlined_call_operand.vmem [shape: f32[33,192], index: 2, kind: input, shape index: {}]
  %s3 = inlined_call_operand.vmem [shape: f32[64,32], index: 3, kind: input, shape index: {}]
  %s4 = inlined_call_operand.vmem [shape: f32[3,32], index: 4, kind: input, shape index: {}]
  %s5 = inlined_call_operand.hbm [shape: f32[16,32], index: 5, kind: output, shape index: {}]
  %s6 = sld [smem:[#allocation0]]
  $region30: #{tpu_custom_call.1} parent=0
    _
  %s8 = ssub.s32 1, %s6
  %s9 = scalar_select 0, %s8, %s6
  $region1: #{tpu_custom_call.1} parent=0
    #allocation2 [shape = 'u8[8192]{0}', space=vmem, size = 0x2000, scoped, tag = 'output window, operand 0, single buffered']
    #allocation3 [shape = 's32[1]{0}', space=sflag, size = 0x4, scoped, tag = 'scoped memory for tpu_custom_call.1']
    %10 = vsyncpa [#allocation3], 0
    // Predicated region
    $region2: #{tpu_custom_call.1} parent=1 // pred_check
      _
    $region3: #{tpu_custom_call.1} parent=1 // pred_check_branch
      %12 = sbr.rel (0) target = $region5
    $region4: #{tpu_custom_call.1} parent=1 // pred_region
      _
    $region5: #{tpu_custom_call.1} parent=1 // pred_fallthru
      _
    // Predicated region
    $region6: #{tpu_custom_call.1} parent=1 // pred_check
      _
    $region7: #{tpu_custom_call.1} parent=1 // pred_check_branch
      %14 = sbr.rel (0) target = $region9
    $region8: #{tpu_custom_call.1} parent=1 // pred_region
      _
    $region9: #{tpu_custom_call.1} parent=1 // pred_fallthru
      _
    // Predicated region
    $region10: #{tpu_custom_call.1} parent=1 // pred_check
      _
    $region11: #{tpu_custom_call.1} parent=1 // pred_check_branch
      %16 = sbr.rel (0) target = $region13
    $region12: #{tpu_custom_call.1} parent=1 // pred_region
      _
    $region13: #{tpu_custom_call.1} parent=1 // pred_fallthru
      _
    // Predicated region
    $region14: #{tpu_custom_call.1} parent=1 // pred_check
      _
    $region15: #{tpu_custom_call.1} parent=1 // pred_check_branch
      %18 = sbr.rel (0) target = $region17
    $region16: #{tpu_custom_call.1} parent=1 // pred_region
      _
    $region17: #{tpu_custom_call.1} parent=1 // pred_fallthru
      _
    // Predicated region
    $region18: #{tpu_custom_call.1} parent=1 // pred_check
      _
    $region19: #{tpu_custom_call.1} parent=1 // pred_check_branch
      %20 = sbr.rel (0) target = $region21
    $region20: #{tpu_custom_call.1} parent=1 // pred_region
      _
    $region21: #{tpu_custom_call.1} parent=1 // pred_fallthru
      _
    %v21 = vld [vmem:[%s0] sm:$0xff]
    %v22 = vld [vmem:[%s0 + $0x8] sm:$0xff]
    %v23 = vld [vmem:[%s2] sm:$0xff]
    %v24 = vld [vmem:[%s2 + $0x8] sm:$0xff]
    %v25 = vld [vmem:[%s2 + $0x10] sm:$0xff]
    %v26 = vld [vmem:[%s2 + $0x18] sm:$0xff]
    %v27 = vld [vmem:[%s2 + $0x20] sm:$0xff]
    %v28 = vld [vmem:[%s2 + $0x28] sm:$0xff]
    %v29 = vld [vmem:[%s2 + $0x30] sm:$0xff]
    %v30 = vld [vmem:[%s2 + $0x38] sm:$0xff]
    %v31 = vld [vmem:[%s2 + $0x40] sm:$0x1]
    %v32 = vld [vmem:[%s2 + $0x48] sm:$0x1]
    %vm33 = vcmask 269312
    %v35 = vsel %vm33, %v21, 0
    %v38 = vsel %vm33, %v22, 0
    %vm40 = vcmask 1040384
    %v42 = vsel %vm40, %v31, 0
    %v45 = vsel %vm40, %v32, 0
    %47 = vmatprep.subr.mxu0 %v24
    %48 = vmatpush1.msra.mxu0 %v23
    %49 = vmatprep.subr.mxu0 %v26
    %50 = vmatpush1.msra.mxu0 %v25
    %51 = vmatprep.subr.mxu0 %v28
    %52 = vmatpush1.msra.mxu0 %v27
    %53 = vmatprep.subr.mxu0 %v30
    %54 = vmatpush1.msra.mxu0 %v29
    %55 = vmatprep.subr.mxu0 %v45
    %56 = vmatpush1.msra.mxu0 %v42
    %57 = vmatprep.subr.mxu0 0.0
    %58 = vmatpush1.msra.mxu0 0.0
    %59 = vmatprep.subr.mxu0 0.0
    %60 = vmatpush1.msra.mxu0 0.0
    %61 = vmatprep.subr.mxu0 0.0
    %62 = vmatpush1.msra.mxu0 0.0
    %63 = vmatprep.subr.mxu0 0.0
    %64 = vmatpush1.msra.mxu0 0.0
    %65 = vmatprep.subr.mxu0 0.0
    %66 = vmatpush1.msra.mxu0 0.0
    %67 = vmatprep.subr.mxu0 0.0
    %68 = vmatpush1.msra.mxu0 0.0
    %69 = vmatprep.subr.mxu0 0.0
    %70 = vmatpush1.msra.mxu0 0.0
    %71 = vmatprep.subr.mxu0 0.0
    %72 = vmatpush1.msra.mxu0 0.0
    %73 = vmatprep.subr.mxu0 0.0
    %74 = vmatpush1.msra.mxu0 0.0
    %75 = vmatprep.subr.mxu0 0.0
    %76 = vmatpush1.msra.mxu0 0.0
    %77 = vmatprep.subr.mxu0 0.0
    %78 = vmatpush1.msra.mxu0 0.0
    %79 = vmatprep.subr.mxu0 0.0
    %80 = vmatpush1.msra.mxu0 0.0
    %81 = vmatprep.subr.mxu0 0.0
    %82 = vmatpush1.msra.mxu0 0.0
    %83 = vmatprep.subr.mxu0 0.0
    %84 = vmatpush1.msra.mxu0 0.0
    %85 = vmatprep.subr.mxu0 0.0
    %86 = vmatpush1.msra.mxu0 0.0
    %87 = vmatprep.subr.mxu0 0.0
    %88 = vmatpush1.msra.mxu0 0.0
    %89 = vmatprep.subr.mxu0 0.0
    %90 = vmatpush1.msra.mxu0 0.0
    %91 = vmatprep.subr.mxu0 0.0
    %92 = vmatpush1.msra.mxu0 0.0
    %93 = vmatprep.subr.mxu0 0.0
    %94 = vmatpush1.msra.mxu0 0.0
    %95 = vmatprep.subr.mxu0 0.0
    %96 = vmatpush1.msra.mxu0 0.0
    %97 = vmatprep.subr.mxu0 0.0
    %98 = vmatpush1.msra.mxu0 0.0
    %99 = vmatprep.subr.mxu0 0.0
    %100 = vmatpush1.msra.mxu0 0.0
    %101 = vmatprep.subr.mxu0 0.0
    %102 = vmatpush1.msra.mxu0 0.0
    %103 = vmatprep.subr.mxu0 0.0
    %104 = vmatpush1.msra.mxu0 0.0
    %105 = vmatprep.subr.mxu0 0.0
    %106 = vmatpush1.msra.mxu0 0.0
    %107 = vmatprep.subr.mxu0 0.0
    %108 = vmatpush1.msra.mxu0 0.0
    %109 = vmatprep.subr.mxu0 0.0
    %110 = vmatpush1.msra.mxu0 0.0
    %111 = vmatprep.mubr.f32.mxu0 0.0
    %112 = vmatmul.mubr.f32.gmra.mrb[0].mxu0 %v35
    %v113 = vpop.f32.mrb[0].mxu0
    %v114 = vadd.f32 0.0, %v113
    %v115 = vpop.f32.mrb[0].mxu0
    %v116 = vadd.f32 0.0, %v115
    %117 = vmatprep.mubr.f32.mxu0 0.0
    %118 = vmatmul.mubr.f32.gmra.mrb[0].mxu0 %v38
    %v119 = vpop.f32.mrb[0].mxu0
    %v120 = vadd.f32 0.0, %v119
    %v121 = vpop.f32.mrb[0].mxu0
    %v122 = vadd.f32 0.0, %v121
    %123 = vdwg.mxu0
    %v124 = vld [vmem:[%s4] sm:$0x1]
    %v125 = vld [vmem:[%s4 + $0x1] sm:$0x1]
    %v126 = vld [vmem:[%s4 + $0x2] sm:$0x1]
    %v127 = vld [vmem:[%s1] sm:$0x1]
    %v128 = vlaneseq
    %v129 = vshrl.u32 %v128, 7
    %v130 = vsub.s32 0, %v129
    %v131 = vrot.slane %v127, %v130
    %133 = vrot.lane.b32.xlu0 %v114, 64
    %v134 = vpop.permute.xlu0 %133
    %vm135 = vcmask 130048
    %v136 = vsel %vm135, %v114, 0
    %v138 = vsel %vm135, %v134, 0
    %140 = vmatprep.subr.mxu0 0.0
    %141 = vmatpush1.xpose.msra.mxu0 %v138
    %142 = vmatprep.subr.mxu0 0.0
    %143 = vmatpush1.xpose.msra.mxu0 0.0
    %144 = vmatprep.subr.mxu0 0.0
    %145 = vmatpush1.xpose.msra.mxu0 0.0
    %146 = vmatprep.subr.mxu0 0.0
    %147 = vmatpush1.xpose.msra.mxu0 0.0
    %148 = vmatprep.subr.mxu0 0.0
    %149 = vmatpush1.xpose.msra.mxu0 0.0
    %150 = vmatprep.subr.mxu0 0.0
    %151 = vmatpush1.xpose.msra.mxu0 0.0
    %152 = vmatprep.subr.mxu0 0.0
    %153 = vmatpush1.xpose.msra.mxu0 0.0
    %154 = vmatprep.subr.mxu0 0.0
    %155 = vmatpush1.xpose.msra.mxu0 0.0
    %156 = vmatprep.subr.mxu0 0.0
    %157 = vmatpush1.xpose.msra.mxu0 0.0
    %158 = vmatprep.subr.mxu0 0.0
    %159 = vmatpush1.xpose.msra.mxu0 0.0
    %160 = vmatprep.subr.mxu0 0.0
    %161 = vmatpush1.xpose.msra.mxu0 0.0
    %162 = vmatprep.subr.mxu0 0.0
    %163 = vmatpush1.xpose.msra.mxu0 0.0
    %164 = vmatprep.subr.mxu0 0.0
    %165 = vmatpush1.xpose.msra.mxu0 0.0
    %166 = vmatprep.subr.mxu0 0.0
    %167 = vmatpush1.xpose.msra.mxu0 0.0
    %168 = vmatprep.subr.mxu0 0.0
    %169 = vmatpush1.xpose.msra.mxu0 0.0
    %170 = vmatprep.subr.mxu0 0.0
    %171 = vmatpush1.xpose.msra.mxu0 0.0
    %172 = vmatprep.subr.mxu0 0.0
    %173 = vmatpush1.xpose.msra.mxu0 0.0
    %174 = vmatprep.subr.mxu0 0.0
    %175 = vmatpush1.xpose.msra.mxu0 0.0
    %176 = vmatprep.subr.mxu0 0.0
    %177 = vmatpush1.xpose.msra.mxu0 0.0
    %178 = vmatprep.subr.mxu0 0.0
    %179 = vmatpush1.xpose.msra.mxu0 0.0
    %180 = vmatprep.subr.mxu0 0.0
    %181 = vmatpush1.xpose.msra.mxu0 0.0
    %182 = vmatprep.subr.mxu0 0.0
    %183 = vmatpush1.xpose.msra.mxu0 0.0
    %184 = vmatprep.subr.mxu0 0.0
    %185 = vmatpush1.xpose.msra.mxu0 0.0
    %186 = vmatprep.subr.mxu0 0.0
    %187 = vmatpush1.xpose.msra.mxu0 0.0
    %188 = vmatprep.subr.mxu0 0.0
    %189 = vmatpush1.xpose.msra.mxu0 0.0
    %190 = vmatprep.subr.mxu0 0.0
    %191 = vmatpush1.xpose.msra.mxu0 0.0
    %192 = vmatprep.subr.mxu0 0.0
    %193 = vmatpush1.xpose.msra.mxu0 0.0
    %194 = vmatprep.subr.mxu0 0.0
    %195 = vmatpush1.xpose.msra.mxu0 0.0
    %196 = vmatprep.subr.mxu0 0.0
    %197 = vmatpush1.xpose.msra.mxu0 0.0
    %198 = vmatprep.subr.mxu0 0.0
    %199 = vmatpush1.xpose.msra.mxu0 0.0
    %200 = vmatprep.subr.mxu0 0.0
    %201 = vmatpush1.xpose.msra.mxu0 0.0
    %202 = vmatprep.subr.mxu0 0.0
    %203 = vmatpush1.xpose.msra.mxu0 0.0
    %204 = vmatprep.mubr.f32.mxu0 0.0
    %205 = vmatmul.mubr.f32.gmra.mrb[0].mxu0 %v136
    %v206 = vpop.f32.mrb[0].mxu0
    %v207 = vadd.f32 %v131, %v206
    %v208 = vpop.f32.mrb[0].mxu0
    %209 = vdwg.mxu0
    %vm210 = vcmask 64512
    %v211 = vsel %vm210, %v207, -inf
    %212 = vmax.xlane.f32.xlu0 %v211
    %v213 = vpop.xlane.xlu0 %212
    %v214 = vsub.f32 %v207, %v213
    %v215 = vmul.f32 %v214, 1.442695
    %v216 = vpow.pop %v215
    %v217 = vsel %vm210, %v216, 0.0
    %218 = vadd.xlane.f32.xlu0 %v217
    %v219 = vpop.xlane.xlu0 %218
    %v220 = vrcp.pop %v219
    %v221 = vmul.f32 %v216, %v220
    %v223 = vsel %vm210, %v221, 0
    %225 = vmatprep.subr.mxu0 0.0
    %226 = vmatpush1.msra.mxu0 %v116
    %227 = vmatprep.subr.mxu0 0.0
    %228 = vmatpush1.msra.mxu0 0.0
    %229 = vmatprep.subr.mxu0 0.0
    %230 = vmatpush1.msra.mxu0 0.0
    %231 = vmatprep.subr.mxu0 0.0
    %232 = vmatpush1.msra.mxu0 0.0
    %233 = vmatprep.subr.mxu0 0.0
    %234 = vmatpush1.msra.mxu0 0.0
    %235 = vmatprep.subr.mxu0 0.0
    %236 = vmatpush1.msra.mxu0 0.0
    %237 = vmatprep.subr.mxu0 0.0
    %238 = vmatpush1.msra.mxu0 0.0
    %239 = vmatprep.subr.mxu0 0.0
    %240 = vmatpush1.msra.mxu0 0.0
    %241 = vmatprep.subr.mxu0 0.0
    %242 = vmatpush1.msra.mxu0 0.0
    %243 = vmatprep.subr.mxu0 0.0
    %244 = vmatpush1.msra.mxu0 0.0
    %245 = vmatprep.subr.mxu0 0.0
    %246 = vmatpush1.msra.mxu0 0.0
    %247 = vmatprep.subr.mxu0 0.0
    %248 = vmatpush1.msra.mxu0 0.0
    %249 = vmatprep.subr.mxu0 0.0
    %250 = vmatpush1.msra.mxu0 0.0
    %251 = vmatprep.subr.mxu0 0.0
    %252 = vmatpush1.msra.mxu0 0.0
    %253 = vmatprep.subr.mxu0 0.0
    %254 = vmatpush1.msra.mxu0 0.0
    %255 = vmatprep.subr.mxu0 0.0
    %256 = vmatpush1.msra.mxu0 0.0
    %257 = vmatprep.subr.mxu0 0.0
    %258 = vmatpush1.msra.mxu0 0.0
    %259 = vmatprep.subr.mxu0 0.0
    %260 = vmatpush1.msra.mxu0 0.0
    %261 = vmatprep.subr.mxu0 0.0
    %262 = vmatpush1.msra.mxu0 0.0
    %263 = vmatprep.subr.mxu0 0.0
    %264 = vmatpush1.msra.mxu0 0.0
    %265 = vmatprep.subr.mxu0 0.0
    %266 = vmatpush1.msra.mxu0 0.0
    %267 = vmatprep.subr.mxu0 0.0
    %268 = vmatpush1.msra.mxu0 0.0
    %269 = vmatprep.subr.mxu0 0.0
    %270 = vmatpush1.msra.mxu0 0.0
    %271 = vmatprep.subr.mxu0 0.0
    %272 = vmatpush1.msra.mxu0 0.0
    %273 = vmatprep.subr.mxu0 0.0
    %274 = vmatpush1.msra.mxu0 0.0
    %275 = vmatprep.subr.mxu0 0.0
    %276 = vmatpush1.msra.mxu0 0.0
    %277 = vmatprep.subr.mxu0 0.0
    %278 = vmatpush1.msra.mxu0 0.0
    %279 = vmatprep.subr.mxu0 0.0
    %280 = vmatpush1.msra.mxu0 0.0
    %281 = vmatprep.subr.mxu0 0.0
    %282 = vmatpush1.msra.mxu0 0.0
    %283 = vmatprep.subr.mxu0 0.0
    %284 = vmatpush1.msra.mxu0 0.0
    %285 = vmatprep.subr.mxu0 0.0
    %286 = vmatpush1.msra.mxu0 0.0
    %287 = vmatprep.subr.mxu0 0.0
    %288 = vmatpush1.msra.mxu0 0.0
    %289 = vmatprep.mubr.f32.mxu0 0.0
    %290 = vmatmul.mubr.f32.gmra.mrb[0].mxu0 %v223
    %v291 = vpop.f32.mrb[0].mxu0
    %v292 = vadd.f32 0.0, %v291
    %v293 = vpop.f32.mrb[0].mxu0
    %294 = vdwg.mxu0
    %v295 = vld [vmem:[%s3] sm:$0xff]
    %v296 = vld [vmem:[%s3 + $0x8] sm:$0xff]
    %297 = vrot.lane.b32.xlu0 %v114, 112
    %v298 = vpop.permute.xlu0 %297
    %299 = vrot.lane.b32.xlu0 %v114, 48
    %v300 = vpop.permute.xlu0 %299
    %v301 = vsel %vm135, %v298, 0
    %v303 = vsel %vm135, %v300, 0
    %305 = vmatprep.subr.mxu0 0.0
    %306 = vmatpush1.xpose.msra.mxu0 %v303
    %307 = vmatprep.subr.mxu0 0.0
    %308 = vmatpush1.xpose.msra.mxu0 0.0
    %309 = vmatprep.subr.mxu0 0.0
    %310 = vmatpush1.xpose.msra.mxu0 0.0
    %311 = vmatprep.subr.mxu0 0.0
    %312 = vmatpush1.xpose.msra.mxu0 0.0
    %313 = vmatprep.subr.mxu0 0.0
    %314 = vmatpush1.xpose.msra.mxu0 0.0
    %315 = vmatprep.subr.mxu0 0.0
    %316 = vmatpush1.xpose.msra.mxu0 0.0
    %317 = vmatprep.subr.mxu0 0.0
    %318 = vmatpush1.xpose.msra.mxu0 0.0
    %319 = vmatprep.subr.mxu0 0.0
    %320 = vmatpush1.xpose.msra.mxu0 0.0
    %321 = vmatprep.subr.mxu0 0.0
    %322 = vmatpush1.xpose.msra.mxu0 0.0
    %323 = vmatprep.subr.mxu0 0.0
    %324 = vmatpush1.xpose.msra.mxu0 0.0
    %325 = vmatprep.subr.mxu0 0.0
    %326 = vmatpush1.xpose.msra.mxu0 0.0
    %327 = vmatprep.subr.mxu0 0.0
    %328 = vmatpush1.xpose.msra.mxu0 0.0
    %329 = vmatprep.subr.mxu0 0.0
    %330 = vmatpush1.xpose.msra.mxu0 0.0
    %331 = vmatprep.subr.mxu0 0.0
    %332 = vmatpush1.xpose.msra.mxu0 0.0
    %333 = vmatprep.subr.mxu0 0.0
    %334 = vmatpush1.xpose.msra.mxu0 0.0
    %335 = vmatprep.subr.mxu0 0.0
    %336 = vmatpush1.xpose.msra.mxu0 0.0
    %337 = vmatprep.subr.mxu0 0.0
    %338 = vmatpush1.xpose.msra.mxu0 0.0
    %339 = vmatprep.subr.mxu0 0.0
    %340 = vmatpush1.xpose.msra.mxu0 0.0
    %341 = vmatprep.subr.mxu0 0.0
    %342 = vmatpush1.xpose.msra.mxu0 0.0
    %343 = vmatprep.subr.mxu0 0.0
    %344 = vmatpush1.xpose.msra.mxu0 0.0
    %345 = vmatprep.subr.mxu0 0.0
    %346 = vmatpush1.xpose.msra.mxu0 0.0
    %347 = vmatprep.subr.mxu0 0.0
    %348 = vmatpush1.xpose.msra.mxu0 0.0
    %349 = vmatprep.subr.mxu0 0.0
    %350 = vmatpush1.xpose.msra.mxu0 0.0
    %351 = vmatprep.subr.mxu0 0.0
    %352 = vmatpush1.xpose.msra.mxu0 0.0
    %353 = vmatprep.subr.mxu0 0.0
    %354 = vmatpush1.xpose.msra.mxu0 0.0
    %355 = vmatprep.subr.mxu0 0.0
    %356 = vmatpush1.xpose.msra.mxu0 0.0
    %357 = vmatprep.subr.mxu0 0.0
    %358 = vmatpush1.xpose.msra.mxu0 0.0
    %359 = vmatprep.subr.mxu0 0.0
    %360 = vmatpush1.xpose.msra.mxu0 0.0
    %361 = vmatprep.subr.mxu0 0.0
    %362 = vmatpush1.xpose.msra.mxu0 0.0
    %363 = vmatprep.subr.mxu0 0.0
    %364 = vmatpush1.xpose.msra.mxu0 0.0
    %365 = vmatprep.subr.mxu0 0.0
    %366 = vmatpush1.xpose.msra.mxu0 0.0
    %367 = vmatprep.subr.mxu0 0.0
    %368 = vmatpush1.xpose.msra.mxu0 0.0
    %369 = vmatprep.mubr.f32.mxu0 0.0
    %370 = vmatmul.mubr.f32.gmra.mrb[0].mxu0 %v301
    %v371 = vpop.f32.mrb[0].mxu0
    %v372 = vadd.f32 %v131, %v371
    %v373 = vpop.f32.mrb[0].mxu0
    %374 = vdwg.mxu0
    %v375 = vsel %vm210, %v372, -inf
    %376 = vmax.xlane.f32.xlu0 %v375
    %v377 = vpop.xlane.xlu0 %376
    %v378 = vsub.f32 %v372, %v377
    %v379 = vmul.f32 %v378, 1.442695
    %v380 = vpow.pop %v379
    %v381 = vsel %vm210, %v380, 0.0
    %382 = vadd.xlane.f32.xlu0 %v381
    %v383 = vpop.xlane.xlu0 %382
    %v384 = vrcp.pop %v383
    %v385 = vmul.f32 %v380, %v384
    %387 = vrot.lane.b32.xlu0 %v116, 112
    %v388 = vpop.permute.xlu0 %387
    %v391 = vsel %vm210, %v385, 0
    %393 = vmatprep.subr.mxu0 0.0
    %394 = vmatpush1.msra.mxu0 %v388
    %395 = vmatprep.subr.mxu0 0.0
    %396 = vmatpush1.msra.mxu0 0.0
    %397 = vmatprep.subr.mxu0 0.0
    %398 = vmatpush1.msra.mxu0 0.0
    %399 = vmatprep.subr.mxu0 0.0
    %400 = vmatpush1.msra.mxu0 0.0
    %401 = vmatprep.subr.mxu0 0.0
    %402 = vmatpush1.msra.mxu0 0.0
    %403 = vmatprep.subr.mxu0 0.0
    %404 = vmatpush1.msra.mxu0 0.0
    %405 = vmatprep.subr.mxu0 0.0
    %406 = vmatpush1.msra.mxu0 0.0
    %407 = vmatprep.subr.mxu0 0.0
    %408 = vmatpush1.msra.mxu0 0.0
    %409 = vmatprep.subr.mxu0 0.0
    %410 = vmatpush1.msra.mxu0 0.0
    %411 = vmatprep.subr.mxu0 0.0
    %412 = vmatpush1.msra.mxu0 0.0
    %413 = vmatprep.subr.mxu0 0.0
    %414 = vmatpush1.msra.mxu0 0.0
    %415 = vmatprep.subr.mxu0 0.0
    %416 = vmatpush1.msra.mxu0 0.0
    %417 = vmatprep.subr.mxu0 0.0
    %418 = vmatpush1.msra.mxu0 0.0
    %419 = vmatprep.subr.mxu0 0.0
    %420 = vmatpush1.msra.mxu0 0.0
    %421 = vmatprep.subr.mxu0 0.0
    %422 = vmatpush1.msra.mxu0 0.0
    %423 = vmatprep.subr.mxu0 0.0
    %424 = vmatpush1.msra.mxu0 0.0
    %425 = vmatprep.subr.mxu0 0.0
    %426 = vmatpush1.msra.mxu0 0.0
    %427 = vmatprep.subr.mxu0 0.0
    %428 = vmatpush1.msra.mxu0 0.0
    %429 = vmatprep.subr.mxu0 0.0
    %430 = vmatpush1.msra.mxu0 0.0
    %431 = vmatprep.subr.mxu0 0.0
    %432 = vmatpush1.msra.mxu0 0.0
    %433 = vmatprep.subr.mxu0 0.0
    %434 = vmatpush1.msra.mxu0 0.0
    %435 = vmatprep.subr.mxu0 0.0
    %436 = vmatpush1.msra.mxu0 0.0
    %437 = vmatprep.subr.mxu0 0.0
    %438 = vmatpush1.msra.mxu0 0.0
    %439 = vmatprep.subr.mxu0 0.0
    %440 = vmatpush1.msra.mxu0 0.0
    %441 = vmatprep.subr.mxu0 0.0
    %442 = vmatpush1.msra.mxu0 0.0
    %443 = vmatprep.subr.mxu0 0.0
    %444 = vmatpush1.msra.mxu0 0.0
    %445 = vmatprep.subr.mxu0 0.0
    %446 = vmatpush1.msra.mxu0 0.0
    %447 = vmatprep.subr.mxu0 0.0
    %448 = vmatpush1.msra.mxu0 0.0
    %449 = vmatprep.subr.mxu0 0.0
    %450 = vmatpush1.msra.mxu0 0.0
    %451 = vmatprep.subr.mxu0 0.0
    %452 = vmatpush1.msra.mxu0 0.0
    %453 = vmatprep.subr.mxu0 0.0
    %454 = vmatpush1.msra.mxu0 0.0
    %455 = vmatprep.subr.mxu0 0.0
    %456 = vmatpush1.msra.mxu0 0.0
    %457 = vmatprep.mubr.f32.mxu0 0.0
    %458 = vmatmul.mubr.f32.gmra.mrb[0].mxu0 %v391
    %v459 = vpop.f32.mrb[0].mxu0
    %v460 = vadd.f32 0.0, %v459
    %v461 = vpop.f32.mrb[0].mxu0
    %462 = vdwg.mxu0
    %v463 = vld [vmem:[%s3 + $0x10] sm:$0xff]
    %v464 = vld [vmem:[%s3 + $0x18] sm:$0xff]
    %v466 = vsel %vm135, %v460, 0
    %468 = vmatprep.subr.mxu0 0.0
    %469 = vmatpush1.msra.mxu0 %v463
    %470 = vmatprep.subr.mxu0 0.0
    %471 = vmatpush1.msra.mxu0 %v464
    %472 = vmatprep.subr.mxu0 0.0
    %473 = vmatpush1.msra.mxu0 0.0
    %474 = vmatprep.subr.mxu0 0.0
    %475 = vmatpush1.msra.mxu0 0.0
    %476 = vmatprep.subr.mxu0 0.0
    %477 = vmatpush1.msra.mxu0 0.0
    %478 = vmatprep.subr.mxu0 0.0
    %479 = vmatpush1.msra.mxu0 0.0
    %480 = vmatprep.subr.mxu0 0.0
    %481 = vmatpush1.msra.mxu0 0.0
    %482 = vmatprep.subr.mxu0 0.0
    %483 = vmatpush1.msra.mxu0 0.0
    %484 = vmatprep.subr.mxu0 0.0
    %485 = vmatpush1.msra.mxu0 0.0
    %486 = vmatprep.subr.mxu0 0.0
    %487 = vmatpush1.msra.mxu0 0.0
    %488 = vmatprep.subr.mxu0 0.0
    %489 = vmatpush1.msra.mxu0 0.0
    %490 = vmatprep.subr.mxu0 0.0
    %491 = vmatpush1.msra.mxu0 0.0
    %492 = vmatprep.subr.mxu0 0.0
    %493 = vmatpush1.msra.mxu0 0.0
    %494 = vmatprep.subr.mxu0 0.0
    %495 = vmatpush1.msra.mxu0 0.0
    %496 = vmatprep.subr.mxu0 0.0
    %497 = vmatpush1.msra.mxu0 0.0
    %498 = vmatprep.subr.mxu0 0.0
    %499 = vmatpush1.msra.mxu0 0.0
    %500 = vmatprep.subr.mxu0 0.0
    %501 = vmatpush1.msra.mxu0 0.0
    %502 = vmatprep.subr.mxu0 0.0
    %503 = vmatpush1.msra.mxu0 0.0
    %504 = vmatprep.subr.mxu0 0.0
    %505 = vmatpush1.msra.mxu0 0.0
    %506 = vmatprep.subr.mxu0 0.0
    %507 = vmatpush1.msra.mxu0 0.0
    %508 = vmatprep.subr.mxu0 0.0
    %509 = vmatpush1.msra.mxu0 0.0
    %510 = vmatprep.subr.mxu0 0.0
    %511 = vmatpush1.msra.mxu0 0.0
    %512 = vmatprep.subr.mxu0 0.0
    %513 = vmatpush1.msra.mxu0 0.0
    %514 = vmatprep.subr.mxu0 0.0
    %515 = vmatpush1.msra.mxu0 0.0
    %516 = vmatprep.subr.mxu0 0.0
    %517 = vmatpush1.msra.mxu0 0.0
    %518 = vmatprep.subr.mxu0 0.0
    %519 = vmatpush1.msra.mxu0 0.0
    %520 = vmatprep.subr.mxu0 0.0
    %521 = vmatpush1.msra.mxu0 0.0
    %522 = vmatprep.subr.mxu0 0.0
    %523 = vmatpush1.msra.mxu0 0.0
    %524 = vmatprep.subr.mxu0 0.0
    %525 = vmatpush1.msra.mxu0 0.0
    %526 = vmatprep.subr.mxu0 0.0
    %527 = vmatpush1.msra.mxu0 0.0
    %528 = vmatprep.subr.mxu0 0.0
    %529 = vmatpush1.msra.mxu0 0.0
    %530 = vmatprep.subr.mxu0 0.0
    %531 = vmatpush1.msra.mxu0 0.0
    %532 = vmatprep.mubr.f32.mxu0 0.0
    %533 = vmatmul.mubr.f32.gmra.mrb[0].mxu0 %v466
    %v534 = vpop.f32.mrb[0].mxu0
    %v535 = vadd.f32 0.0, %v534
    %v536 = vpop.f32.mrb[0].mxu0
    %537 = vdwg.mxu0
    %v539 = vsel %vm135, %v292, 0
    %541 = vmatprep.subr.mxu0 0.0
    %542 = vmatpush1.msra.mxu0 %v295
    %543 = vmatprep.subr.mxu0 0.0
    %544 = vmatpush1.msra.mxu0 %v296
    %545 = vmatprep.subr.mxu0 0.0
    %546 = vmatpush1.msra.mxu0 0.0
    %547 = vmatprep.subr.mxu0 0.0
    %548 = vmatpush1.msra.mxu0 0.0
    %549 = vmatprep.subr.mxu0 0.0
    %550 = vmatpush1.msra.mxu0 0.0
    %551 = vmatprep.subr.mxu0 0.0
    %552 = vmatpush1.msra.mxu0 0.0
    %553 = vmatprep.subr.mxu0 0.0
    %554 = vmatpush1.msra.mxu0 0.0
    %555 = vmatprep.subr.mxu0 0.0
    %556 = vmatpush1.msra.mxu0 0.0
    %557 = vmatprep.subr.mxu0 0.0
    %558 = vmatpush1.msra.mxu0 0.0
    %559 = vmatprep.subr.mxu0 0.0
    %560 = vmatpush1.msra.mxu0 0.0
    %561 = vmatprep.subr.mxu0 0.0
    %562 = vmatpush1.msra.mxu0 0.0
    %563 = vmatprep.subr.mxu0 0.0
    %564 = vmatpush1.msra.mxu0 0.0
    %565 = vmatprep.subr.mxu0 0.0
    %566 = vmatpush1.msra.mxu0 0.0
    %567 = vmatprep.subr.mxu0 0.0
    %568 = vmatpush1.msra.mxu0 0.0
    %569 = vmatprep.subr.mxu0 0.0
    %570 = vmatpush1.msra.mxu0 0.0
    %571 = vmatprep.subr.mxu0 0.0
    %572 = vmatpush1.msra.mxu0 0.0
    %573 = vmatprep.subr.mxu0 0.0
    %574 = vmatpush1.msra.mxu0 0.0
    %575 = vmatprep.subr.mxu0 0.0
    %576 = vmatpush1.msra.mxu0 0.0
    %577 = vmatprep.subr.mxu0 0.0
    %578 = vmatpush1.msra.mxu0 0.0
    %579 = vmatprep.subr.mxu0 0.0
    %580 = vmatpush1.msra.mxu0 0.0
    %581 = vmatprep.subr.mxu0 0.0
    %582 = vmatpush1.msra.mxu0 0.0
    %583 = vmatprep.subr.mxu0 0.0
    %584 = vmatpush1.msra.mxu0 0.0
    %585 = vmatprep.subr.mxu0 0.0
    %586 = vmatpush1.msra.mxu0 0.0
    %587 = vmatprep.subr.mxu0 0.0
    %588 = vmatpush1.msra.mxu0 0.0
    %589 = vmatprep.subr.mxu0 0.0
    %590 = vmatpush1.msra.mxu0 0.0
    %591 = vmatprep.subr.mxu0 0.0
    %592 = vmatpush1.msra.mxu0 0.0
    %593 = vmatprep.subr.mxu0 0.0
    %594 = vmatpush1.msra.mxu0 0.0
    %595 = vmatprep.subr.mxu0 0.0
    %596 = vmatpush1.msra.mxu0 0.0
    %597 = vmatprep.subr.mxu0 0.0
    %598 = vmatpush1.msra.mxu0 0.0
    %599 = vmatprep.subr.mxu0 0.0
    %600 = vmatpush1.msra.mxu0 0.0
    %601 = vmatprep.subr.mxu0 0.0
    %602 = vmatpush1.msra.mxu0 0.0
    %603 = vmatprep.subr.mxu0 0.0
    %604 = vmatpush1.msra.mxu0 0.0
    %605 = vmatprep.mubr.f32.mxu0 0.0
    %606 = vmatmul.mubr.f32.gmra.mrb[0].mxu0 %v539
    %v607 = vpop.f32.mrb[0].mxu0
    %v608 = vadd.f32 %v535, %v607
    %v609 = vpop.f32.mrb[0].mxu0
    %610 = vdwg.mxu0
    %611 = vrot.lane.b32.xlu0 %v114, 96
    %v612 = vpop.permute.xlu0 %611
    %613 = vrot.lane.b32.xlu0 %v114, 32
    %v614 = vpop.permute.xlu0 %613
    %v615 = vsel %vm135, %v612, 0
    %v617 = vsel %vm135, %v614, 0
    %619 = vmatprep.subr.mxu0 0.0
    %620 = vmatpush1.xpose.msra.mxu0 %v617
    %621 = vmatprep.subr.mxu0 0.0
    %622 = vmatpush1.xpose.msra.mxu0 0.0
    %623 = vmatprep.subr.mxu0 0.0
    %624 = vmatpush1.xpose.msra.mxu0 0.0
    %625 = vmatprep.subr.mxu0 0.0
    %626 = vmatpush1.xpose.msra.mxu0 0.0
    %627 = vmatprep.subr.mxu0 0.0
    %628 = vmatpush1.xpose.msra.mxu0 0.0
    %629 = vmatprep.subr.mxu0 0.0
    %630 = vmatpush1.xpose.msra.mxu0 0.0
    %631 = vmatprep.subr.mxu0 0.0
    %632 = vmatpush1.xpose.msra.mxu0 0.0
    %633 = vmatprep.subr.mxu0 0.0
    %634 = vmatpush1.xpose.msra.mxu0 0.0
    %635 = vmatprep.subr.mxu0 0.0
    %636 = vmatpush1.xpose.msra.mxu0 0.0
    %637 = vmatprep.subr.mxu0 0.0
    %638 = vmatpush1.xpose.msra.mxu0 0.0
    %639 = vmatprep.subr.mxu0 0.0
    %640 = vmatpush1.xpose.msra.mxu0 0.0
    %641 = vmatprep.subr.mxu0 0.0
    %642 = vmatpush1.xpose.msra.mxu0 0.0
    %643 = vmatprep.subr.mxu0 0.0
    %644 = vmatpush1.xpose.msra.mxu0 0.0
    %645 = vmatprep.subr.mxu0 0.0
    %646 = vmatpush1.xpose.msra.mxu0 0.0
    %647 = vmatprep.subr.mxu0 0.0
    %648 = vmatpush1.xpose.msra.mxu0 0.0
    %649 = vmatprep.subr.mxu0 0.0
    %650 = vmatpush1.xpose.msra.mxu0 0.0
    %651 = vmatprep.subr.mxu0 0.0
    %652 = vmatpush1.xpose.msra.mxu0 0.0
    %653 = vmatprep.subr.mxu0 0.0
    %654 = vmatpush1.xpose.msra.mxu0 0.0
    %655 = vmatprep.subr.mxu0 0.0
    %656 = vmatpush1.xpose.msra.mxu0 0.0
    %657 = vmatprep.subr.mxu0 0.0
    %658 = vmatpush1.xpose.msra.mxu0 0.0
    %659 = vmatprep.subr.mxu0 0.0
    %660 = vmatpush1.xpose.msra.mxu0 0.0
    %661 = vmatprep.subr.mxu0 0.0
    %662 = vmatpush1.xpose.msra.mxu0 0.0
    %663 = vmatprep.subr.mxu0 0.0
    %664 = vmatpush1.xpose.msra.mxu0 0.0
    %665 = vmatprep.subr.mxu0 0.0
    %666 = vmatpush1.xpose.msra.mxu0 0.0
    %667 = vmatprep.subr.mxu0 0.0
    %668 = vmatpush1.xpose.msra.mxu0 0.0
    %669 = vmatprep.subr.mxu0 0.0
    %670 = vmatpush1.xpose.msra.mxu0 0.0
    %671 = vmatprep.subr.mxu0 0.0
    %672 = vmatpush1.xpose.msra.mxu0 0.0
    %673 = vmatprep.subr.mxu0 0.0
    %674 = vmatpush1.xpose.msra.mxu0 0.0
    %675 = vmatprep.subr.mxu0 0.0
    %676 = vmatpush1.xpose.msra.mxu0 0.0
    %677 = vmatprep.subr.mxu0 0.0
    %678 = vmatpush1.xpose.msra.mxu0 0.0
    %679 = vmatprep.subr.mxu0 0.0
    %680 = vmatpush1.xpose.msra.mxu0 0.0
    %681 = vmatprep.subr.mxu0 0.0
    %682 = vmatpush1.xpose.msra.mxu0 0.0
    %683 = vmatprep.mubr.f32.mxu0 0.0
    %684 = vmatmul.mubr.f32.gmra.mrb[0].mxu0 %v615
    %v685 = vpop.f32.mrb[0].mxu0
    %v686 = vadd.f32 %v131, %v685
    %v687 = vpop.f32.mrb[0].mxu0
    %688 = vdwg.mxu0
    %v689 = vsel %vm210, %v686, -inf
    %690 = vmax.xlane.f32.xlu0 %v689
    %v691 = vpop.xlane.xlu0 %690
    %v692 = vsub.f32 %v686, %v691
    %v693 = vmul.f32 %v692, 1.442695
    %v694 = vpow.pop %v693
    %v695 = vsel %vm210, %v694, 0.0
    %696 = vadd.xlane.f32.xlu0 %v695
    %v697 = vpop.xlane.xlu0 %696
    %v698 = vrcp.pop %v697
    %v699 = vmul.f32 %v694, %v698
    %700 = vrot.lane.b32.xlu0 %v116, 96
    %v701 = vpop.permute.xlu0 %700
    %v704 = vsel %vm210, %v699, 0
    %706 = vmatprep.subr.mxu0 0.0
    %707 = vmatpush1.msra.mxu0 %v701
    %708 = vmatprep.subr.mxu0 0.0
    %709 = vmatpush1.msra.mxu0 0.0
    %710 = vmatprep.subr.mxu0 0.0
    %711 = vmatpush1.msra.mxu0 0.0
    %712 = vmatprep.subr.mxu0 0.0
    %713 = vmatpush1.msra.mxu0 0.0
    %714 = vmatprep.subr.mxu0 0.0
    %715 = vmatpush1.msra.mxu0 0.0
    %716 = vmatprep.subr.mxu0 0.0
    %717 = vmatpush1.msra.mxu0 0.0
    %718 = vmatprep.subr.mxu0 0.0
    %719 = vmatpush1.msra.mxu0 0.0
    %720 = vmatprep.subr.mxu0 0.0
    %721 = vmatpush1.msra.mxu0 0.0
    %722 = vmatprep.subr.mxu0 0.0
    %723 = vmatpush1.msra.mxu0 0.0
    %724 = vmatprep.subr.mxu0 0.0
    %725 = vmatpush1.msra.mxu0 0.0
    %726 = vmatprep.subr.mxu0 0.0
    %727 = vmatpush1.msra.mxu0 0.0
    %728 = vmatprep.subr.mxu0 0.0
    %729 = vmatpush1.msra.mxu0 0.0
    %730 = vmatprep.subr.mxu0 0.0
    %731 = vmatpush1.msra.mxu0 0.0
    %732 = vmatprep.subr.mxu0 0.0
    %733 = vmatpush1.msra.mxu0 0.0
    %734 = vmatprep.subr.mxu0 0.0
    %735 = vmatpush1.msra.mxu0 0.0
    %736 = vmatprep.subr.mxu0 0.0
    %737 = vmatpush1.msra.mxu0 0.0
    %738 = vmatprep.subr.mxu0 0.0
    %739 = vmatpush1.msra.mxu0 0.0
    %740 = vmatprep.subr.mxu0 0.0
    %741 = vmatpush1.msra.mxu0 0.0
    %742 = vmatprep.subr.mxu0 0.0
    %743 = vmatpush1.msra.mxu0 0.0
    %744 = vmatprep.subr.mxu0 0.0
    %745 = vmatpush1.msra.mxu0 0.0
    %746 = vmatprep.subr.mxu0 0.0
    %747 = vmatpush1.msra.mxu0 0.0
    %748 = vmatprep.subr.mxu0 0.0
    %749 = vmatpush1.msra.mxu0 0.0
    %750 = vmatprep.subr.mxu0 0.0
    %751 = vmatpush1.msra.mxu0 0.0
    %752 = vmatprep.subr.mxu0 0.0
    %753 = vmatpush1.msra.mxu0 0.0
    %754 = vmatprep.subr.mxu0 0.0
    %755 = vmatpush1.msra.mxu0 0.0
    %756 = vmatprep.subr.mxu0 0.0
    %757 = vmatpush1.msra.mxu0 0.0
    %758 = vmatprep.subr.mxu0 0.0
    %759 = vmatpush1.msra.mxu0 0.0
    %760 = vmatprep.subr.mxu0 0.0
    %761 = vmatpush1.msra.mxu0 0.0
    %762 = vmatprep.subr.mxu0 0.0
    %763 = vmatpush1.msra.mxu0 0.0
    %764 = vmatprep.subr.mxu0 0.0
    %765 = vmatpush1.msra.mxu0 0.0
    %766 = vmatprep.subr.mxu0 0.0
    %767 = vmatpush1.msra.mxu0 0.0
    %768 = vmatprep.subr.mxu0 0.0
    %769 = vmatpush1.msra.mxu0 0.0
    %770 = vmatprep.mubr.f32.mxu0 0.0
    %771 = vmatmul.mubr.f32.gmra.mrb[0].mxu0 %v704
    %v772 = vpop.f32.mrb[0].mxu0
    %v773 = vadd.f32 0.0, %v772
    %v774 = vpop.f32.mrb[0].mxu0
    %775 = vdwg.mxu0
    %v776 = vld [vmem:[%s3 + $0x20] sm:$0xff]
    %v777 = vld [vmem:[%s3 + $0x28] sm:$0xff]
    %v779 = vsel %vm135, %v773, 0
    %781 = vmatprep.subr.mxu0 0.0
    %782 = vmatpush1.msra.mxu0 %v776
    %783 = vmatprep.subr.mxu0 0.0
    %784 = vmatpush1.msra.mxu0 %v777
    %785 = vmatprep.subr.mxu0 0.0
    %786 = vmatpush1.msra.mxu0 0.0
    %787 = vmatprep.subr.mxu0 0.0
    %788 = vmatpush1.msra.mxu0 0.0
    %789 = vmatprep.subr.mxu0 0.0
    %790 = vmatpush1.msra.mxu0 0.0
    %791 = vmatprep.subr.mxu0 0.0
    %792 = vmatpush1.msra.mxu0 0.0
    %793 = vmatprep.subr.mxu0 0.0
    %794 = vmatpush1.msra.mxu0 0.0
    %795 = vmatprep.subr.mxu0 0.0
    %796 = vmatpush1.msra.mxu0 0.0
    %797 = vmatprep.subr.mxu0 0.0
    %798 = vmatpush1.msra.mxu0 0.0
    %799 = vmatprep.subr.mxu0 0.0
    %800 = vmatpush1.msra.mxu0 0.0
    %801 = vmatprep.subr.mxu0 0.0
    %802 = vmatpush1.msra.mxu0 0.0
    %803 = vmatprep.subr.mxu0 0.0
    %804 = vmatpush1.msra.mxu0 0.0
    %805 = vmatprep.subr.mxu0 0.0
    %806 = vmatpush1.msra.mxu0 0.0
    %807 = vmatprep.subr.mxu0 0.0
    %808 = vmatpush1.msra.mxu0 0.0
    %809 = vmatprep.subr.mxu0 0.0
    %810 = vmatpush1.msra.mxu0 0.0
    %811 = vmatprep.subr.mxu0 0.0
    %812 = vmatpush1.msra.mxu0 0.0
    %813 = vmatprep.subr.mxu0 0.0
    %814 = vmatpush1.msra.mxu0 0.0
    %815 = vmatprep.subr.mxu0 0.0
    %816 = vmatpush1.msra.mxu0 0.0
    %817 = vmatprep.subr.mxu0 0.0
    %818 = vmatpush1.msra.mxu0 0.0
    %819 = vmatprep.subr.mxu0 0.0
    %820 = vmatpush1.msra.mxu0 0.0
    %821 = vmatprep.subr.mxu0 0.0
    %822 = vmatpush1.msra.mxu0 0.0
    %823 = vmatprep.subr.mxu0 0.0
    %824 = vmatpush1.msra.mxu0 0.0
    %825 = vmatprep.subr.mxu0 0.0
    %826 = vmatpush1.msra.mxu0 0.0
    %827 = vmatprep.subr.mxu0 0.0
    %828 = vmatpush1.msra.mxu0 0.0
    %829 = vmatprep.subr.mxu0 0.0
    %830 = vmatpush1.msra.mxu0 0.0
    %831 = vmatprep.subr.mxu0 0.0
    %832 = vmatpush1.msra.mxu0 0.0
    %833 = vmatprep.subr.mxu0 0.0
    %834 = vmatpush1.msra.mxu0 0.0
    %835 = vmatprep.subr.mxu0 0.0
    %836 = vmatpush1.msra.mxu0 0.0
    %837 = vmatprep.subr.mxu0 0.0
    %838 = vmatpush1.msra.mxu0 0.0
    %839 = vmatprep.subr.mxu0 0.0
    %840 = vmatpush1.msra.mxu0 0.0
    %841 = vmatprep.subr.mxu0 0.0
    %842 = vmatpush1.msra.mxu0 0.0
    %843 = vmatprep.subr.mxu0 0.0
    %844 = vmatpush1.msra.mxu0 0.0
    %845 = vmatprep.mubr.f32.mxu0 0.0
    %846 = vmatmul.mubr.f32.gmra.mrb[0].mxu0 %v779
    %v847 = vpop.f32.mrb[0].mxu0
    %v848 = vadd.f32 0.0, %v847
    %v849 = vpop.f32.mrb[0].mxu0
    %850 = vdwg.mxu0
    %v851 = vadd.f32 %v608, %v848
    %852 = vrot.lane.b32.xlu0 %v114, 80
    %v853 = vpop.permute.xlu0 %852
    %854 = vrot.lane.b32.xlu0 %v114, 16
    %v855 = vpop.permute.xlu0 %854
    %v856 = vsel %vm135, %v853, 0
    %v858 = vsel %vm135, %v855, 0
    %860 = vmatprep.subr.mxu0 0.0
    %861 = vmatpush1.xpose.msra.mxu0 %v858
    %862 = vmatprep.subr.mxu0 0.0
    %863 = vmatpush1.xpose.msra.mxu0 0.0
    %864 = vmatprep.subr.mxu0 0.0
    %865 = vmatpush1.xpose.msra.mxu0 0.0
    %866 = vmatprep.subr.mxu0 0.0
    %867 = vmatpush1.xpose.msra.mxu0 0.0
    %868 = vmatprep.subr.mxu0 0.0
    %869 = vmatpush1.xpose.msra.mxu0 0.0
    %870 = vmatprep.subr.mxu0 0.0
    %871 = vmatpush1.xpose.msra.mxu0 0.0
    %872 = vmatprep.subr.mxu0 0.0
    %873 = vmatpush1.xpose.msra.mxu0 0.0
    %874 = vmatprep.subr.mxu0 0.0
    %875 = vmatpush1.xpose.msra.mxu0 0.0
    %876 = vmatprep.subr.mxu0 0.0
    %877 = vmatpush1.xpose.msra.mxu0 0.0
    %878 = vmatprep.subr.mxu0 0.0
    %879 = vmatpush1.xpose.msra.mxu0 0.0
    %880 = vmatprep.subr.mxu0 0.0
    %881 = vmatpush1.xpose.msra.mxu0 0.0
    %882 = vmatprep.subr.mxu0 0.0
    %883 = vmatpush1.xpose.msra.mxu0 0.0
    %884 = vmatprep.subr.mxu0 0.0
    %885 = vmatpush1.xpose.msra.mxu0 0.0
    %886 = vmatprep.subr.mxu0 0.0
    %887 = vmatpush1.xpose.msra.mxu0 0.0
    %888 = vmatprep.subr.mxu0 0.0
    %889 = vmatpush1.xpose.msra.mxu0 0.0
    %890 = vmatprep.subr.mxu0 0.0
    %891 = vmatpush1.xpose.msra.mxu0 0.0
    %892 = vmatprep.subr.mxu0 0.0
    %893 = vmatpush1.xpose.msra.mxu0 0.0
    %894 = vmatprep.subr.mxu0 0.0
    %895 = vmatpush1.xpose.msra.mxu0 0.0
    %896 = vmatprep.subr.mxu0 0.0
    %897 = vmatpush1.xpose.msra.mxu0 0.0
    %898 = vmatprep.subr.mxu0 0.0
    %899 = vmatpush1.xpose.msra.mxu0 0.0
    %900 = vmatprep.subr.mxu0 0.0
    %901 = vmatpush1.xpose.msra.mxu0 0.0
    %902 = vmatprep.subr.mxu0 0.0
    %903 = vmatpush1.xpose.msra.mxu0 0.0
    %904 = vmatprep.subr.mxu0 0.0
    %905 = vmatpush1.xpose.msra.mxu0 0.0
    %906 = vmatprep.subr.mxu0 0.0
    %907 = vmatpush1.xpose.msra.mxu0 0.0
    %908 = vmatprep.subr.mxu0 0.0
    %909 = vmatpush1.xpose.msra.mxu0 0.0
    %910 = vmatprep.subr.mxu0 0.0
    %911 = vmatpush1.xpose.msra.mxu0 0.0
    %912 = vmatprep.subr.mxu0 0.0
    %913 = vmatpush1.xpose.msra.mxu0 0.0
    %914 = vmatprep.subr.mxu0 0.0
    %915 = vmatpush1.xpose.msra.mxu0 0.0
    %916 = vmatprep.subr.mxu0 0.0
    %917 = vmatpush1.xpose.msra.mxu0 0.0
    %918 = vmatprep.subr.mxu0 0.0
    %919 = vmatpush1.xpose.msra.mxu0 0.0
    %920 = vmatprep.subr.mxu0 0.0
    %921 = vmatpush1.xpose.msra.mxu0 0.0
    %922 = vmatprep.subr.mxu0 0.0
    %923 = vmatpush1.xpose.msra.mxu0 0.0
    %924 = vmatprep.mubr.f32.mxu0 0.0
    %925 = vmatmul.mubr.f32.gmra.mrb[0].mxu0 %v856
    %v926 = vpop.f32.mrb[0].mxu0
    %v927 = vadd.f32 %v131, %v926
    %v928 = vpop.f32.mrb[0].mxu0
    %929 = vdwg.mxu0
    %v930 = vsel %vm210, %v927, -inf
    %931 = vmax.xlane.f32.xlu0 %v930
    %v932 = vpop.xlane.xlu0 %931
    %v933 = vsub.f32 %v927, %v932
    %v934 = vmul.f32 %v933, 1.442695
    %v935 = vpow.pop %v934
    %v936 = vsel %vm210, %v935, 0.0
    %937 = vadd.xlane.f32.xlu0 %v936
    %v938 = vpop.xlane.xlu0 %937
    %v939 = vrcp.pop %v938
    %v940 = vmul.f32 %v935, %v939
    %941 = vrot.lane.b32.xlu0 %v116, 80
    %v942 = vpop.permute.xlu0 %941
    %v945 = vsel %vm210, %v940, 0
    %947 = vmatprep.subr.mxu0 0.0
    %948 = vmatpush1.msra.mxu0 %v942
    %949 = vmatprep.subr.mxu0 0.0
    %950 = vmatpush1.msra.mxu0 0.0
    %951 = vmatprep.subr.mxu0 0.0
    %952 = vmatpush1.msra.mxu0 0.0
    %953 = vmatprep.subr.mxu0 0.0
    %954 = vmatpush1.msra.mxu0 0.0
    %955 = vmatprep.subr.mxu0 0.0
    %956 = vmatpush1.msra.mxu0 0.0
    %957 = vmatprep.subr.mxu0 0.0
    %958 = vmatpush1.msra.mxu0 0.0
    %959 = vmatprep.subr.mxu0 0.0
    %960 = vmatpush1.msra.mxu0 0.0
    %961 = vmatprep.subr.mxu0 0.0
    %962 = vmatpush1.msra.mxu0 0.0
    %963 = vmatprep.subr.mxu0 0.0
    %964 = vmatpush1.msra.mxu0 0.0
    %965 = vmatprep.subr.mxu0 0.0
    %966 = vmatpush1.msra.mxu0 0.0
    %967 = vmatprep.subr.mxu0 0.0
    %968 = vmatpush1.msra.mxu0 0.0
    %969 = vmatprep.subr.mxu0 0.0
    %970 = vmatpush1.msra.mxu0 0.0
    %971 = vmatprep.subr.mxu0 0.0
    %972 = vmatpush1.msra.mxu0 0.0
    %973 = vmatprep.subr.mxu0 0.0
    %974 = vmatpush1.msra.mxu0 0.0
    %975 = vmatprep.subr.mxu0 0.0
    %976 = vmatpush1.msra.mxu0 0.0
    %977 = vmatprep.subr.mxu0 0.0
    %978 = vmatpush1.msra.mxu0 0.0
    %979 = vmatprep.subr.mxu0 0.0
    %980 = vmatpush1.msra.mxu0 0.0
    %981 = vmatprep.subr.mxu0 0.0
    %982 = vmatpush1.msra.mxu0 0.0
    %983 = vmatprep.subr.mxu0 0.0
    %984 = vmatpush1.msra.mxu0 0.0
    %985 = vmatprep.subr.mxu0 0.0
    %986 = vmatpush1.msra.mxu0 0.0
    %987 = vmatprep.subr.mxu0 0.0
    %988 = vmatpush1.msra.mxu0 0.0
    %989 = vmatprep.subr.mxu0 0.0
    %990 = vmatpush1.msra.mxu0 0.0
    %991 = vmatprep.subr.mxu0 0.0
    %992 = vmatpush1.msra.mxu0 0.0
    %993 = vmatprep.subr.mxu0 0.0
    %994 = vmatpush1.msra.mxu0 0.0
    %995 = vmatprep.subr.mxu0 0.0
    %996 = vmatpush1.msra.mxu0 0.0
    %997 = vmatprep.subr.mxu0 0.0
    %998 = vmatpush1.msra.mxu0 0.0
    %999 = vmatprep.subr.mxu0 0.0
    %1000 = vmatpush1.msra.mxu0 0.0
    %1001 = vmatprep.subr.mxu0 0.0
    %1002 = vmatpush1.msra.mxu0 0.0
    %1003 = vmatprep.subr.mxu0 0.0
    %1004 = vmatpush1.msra.mxu0 0.0
    %1005 = vmatprep.subr.mxu0 0.0
    %1006 = vmatpush1.msra.mxu0 0.0
    %1007 = vmatprep.subr.mxu0 0.0
    %1008 = vmatpush1.msra.mxu0 0.0
    %1009 = vmatprep.subr.mxu0 0.0
    %1010 = vmatpush1.msra.mxu0 0.0
    %1011 = vmatprep.mubr.f32.mxu0 0.0
    %1012 = vmatmul.mubr.f32.gmra.mrb[0].mxu0 %v945
    %v1013 = vpop.f32.mrb[0].mxu0
    %v1014 = vadd.f32 0.0, %v1013
    %v1015 = vpop.f32.mrb[0].mxu0
    %1016 = vdwg.mxu0
    %v1017 = vld [vmem:[%s3 + $0x30] sm:$0xff]
    %v1018 = vld [vmem:[%s3 + $0x38] sm:$0xff]
    %v1020 = vsel %vm135, %v1014, 0
    %1022 = vmatprep.subr.mxu0 0.0
    %1023 = vmatpush1.msra.mxu0 %v1017
    %1024 = vmatprep.subr.mxu0 0.0
    %1025 = vmatpush1.msra.mxu0 %v1018
    %1026 = vmatprep.subr.mxu0 0.0
    %1027 = vmatpush1.msra.mxu0 0.0
    %1028 = vmatprep.subr.mxu0 0.0
    %1029 = vmatpush1.msra.mxu0 0.0
    %1030 = vmatprep.subr.mxu0 0.0
    %1031 = vmatpush1.msra.mxu0 0.0
    %1032 = vmatprep.subr.mxu0 0.0
    %1033 = vmatpush1.msra.mxu0 0.0
    %1034 = vmatprep.subr.mxu0 0.0
    %1035 = vmatpush1.msra.mxu0 0.0
    %1036 = vmatprep.subr.mxu0 0.0
    %1037 = vmatpush1.msra.mxu0 0.0
    %1038 = vmatprep.subr.mxu0 0.0
    %1039 = vmatpush1.msra.mxu0 0.0
    %1040 = vmatprep.subr.mxu0 0.0
    %1041 = vmatpush1.msra.mxu0 0.0
    %1042 = vmatprep.subr.mxu0 0.0
    %1043 = vmatpush1.msra.mxu0 0.0
    %1044 = vmatprep.subr.mxu0 0.0
    %1045 = vmatpush1.msra.mxu0 0.0
    %1046 = vmatprep.subr.mxu0 0.0
    %1047 = vmatpush1.msra.mxu0 0.0
    %1048 = vmatprep.subr.mxu0 0.0
    %1049 = vmatpush1.msra.mxu0 0.0
    %1050 = vmatprep.subr.mxu0 0.0
    %1051 = vmatpush1.msra.mxu0 0.0
    %1052 = vmatprep.subr.mxu0 0.0
    %1053 = vmatpush1.msra.mxu0 0.0
    %1054 = vmatprep.subr.mxu0 0.0
    %1055 = vmatpush1.msra.mxu0 0.0
    %1056 = vmatprep.subr.mxu0 0.0
    %1057 = vmatpush1.msra.mxu0 0.0
    %1058 = vmatprep.subr.mxu0 0.0
    %1059 = vmatpush1.msra.mxu0 0.0
    %1060 = vmatprep.subr.mxu0 0.0
    %1061 = vmatpush1.msra.mxu0 0.0
    %1062 = vmatprep.subr.mxu0 0.0
    %1063 = vmatpush1.msra.mxu0 0.0
    %1064 = vmatprep.subr.mxu0 0.0
    %1065 = vmatpush1.msra.mxu0 0.0
    %1066 = vmatprep.subr.mxu0 0.0
    %1067 = vmatpush1.msra.mxu0 0.0
    %1068 = vmatprep.subr.mxu0 0.0
    %1069 = vmatpush1.msra.mxu0 0.0
    %1070 = vmatprep.subr.mxu0 0.0
    %1071 = vmatpush1.msra.mxu0 0.0
    %1072 = vmatprep.subr.mxu0 0.0
    %1073 = vmatpush1.msra.mxu0 0.0
    %1074 = vmatprep.subr.mxu0 0.0
    %1075 = vmatpush1.msra.mxu0 0.0
    %1076 = vmatprep.subr.mxu0 0.0
    %1077 = vmatpush1.msra.mxu0 0.0
    %1078 = vmatprep.subr.mxu0 0.0
    %1079 = vmatpush1.msra.mxu0 0.0
    %1080 = vmatprep.subr.mxu0 0.0
    %1081 = vmatpush1.msra.mxu0 0.0
    %1082 = vmatprep.subr.mxu0 0.0
    %1083 = vmatpush1.msra.mxu0 0.0
    %1084 = vmatprep.subr.mxu0 0.0
    %1085 = vmatpush1.msra.mxu0 0.0
    %1086 = vmatprep.mubr.f32.mxu0 0.0
    %1087 = vmatmul.mubr.f32.gmra.mrb[0].mxu0 %v1020
    %v1088 = vpop.f32.mrb[0].mxu0
    %v1089 = vadd.f32 0.0, %v1088
    %v1090 = vpop.f32.mrb[0].mxu0
    %1091 = vdwg.mxu0
    %v1092 = vadd.f32 %v851, %v1089
    %v1093 = vlaneseq
    %v1094 = vshrl.u32 %v1093, 7
    %v1095 = vsub.s32 0, %v1094
    %v1096 = vrot.slane %v124, %v1095
    %v1097 = vadd.f32 %v1092, %v1096
    %vm1098 = vcmask 261120
    %v1099 = vsel %vm1098, %v1097, 0.0
    %1100 = vadd.xlane.f32.xlu0 %v1099
    %v1101 = vpop.xlane.xlu0 %1100
    %v1102 = vrcp.pop 32.0
    %v1103 = vmul.f32 %v1101, %v1102
    %v1104 = vmul.f32 %v1097, %v1097
    %v1105 = vsel %vm1098, %v1104, 0.0
    %1106 = vadd.xlane.f32.xlu0 %v1105
    %v1107 = vpop.xlane.xlu0 %1106
    %v1108 = vmul.f32 %v1107, %v1102
    %v1109 = vmul.f32 %v1103, %v1103
    %v1110 = vsub.f32 %v1108, %v1109
    %v1111 = vsub.f32 %v1097, %v1103
    %v1112 = vadd.f32 %v1110, 1e-05
    %v1113 = vrsqrt.pop %v1112
    %v1114 = vmul.f32 %v1111, %v1113
    %v1115 = vlaneseq
    %v1116 = vshrl.u32 %v1115, 7
    %v1117 = vsub.s32 0, %v1116
    %v1118 = vrot.slane %v125, %v1117
    %v1119 = vmul.f32 %v1114, %v1118
    %v1120 = vlaneseq
    %v1121 = vshrl.u32 %v1120, 7
    %v1122 = vsub.s32 0, %v1121
    %v1123 = vrot.slane %v126, %v1122
    %v1124 = vadd.f32 %v1119, %v1123
    %1125 = vst.msk [vmem:[#allocation2] sm:$0xff] %vm1098, %v1124
    %v1126 = vld [vmem:[%s1 + $0x1] sm:$0x1]
    %v1127 = vlaneseq
    %v1128 = vshrl.u32 %v1127, 7
    %v1129 = vsub.s32 0, %v1128
    %v1130 = vrot.slane %v1126, %v1129
    %1132 = vrot.lane.b32.xlu0 %v120, 64
    %v1133 = vpop.permute.xlu0 %1132
    %v1134 = vsel %vm135, %v120, 0
    %v1136 = vsel %vm135, %v1133, 0
    %1138 = vmatprep.subr.mxu0 0.0
    %1139 = vmatpush1.xpose.msra.mxu0 %v1136
    %1140 = vmatprep.subr.mxu0 0.0
    %1141 = vmatpush1.xpose.msra.mxu0 0.0
    %1142 = vmatprep.subr.mxu0 0.0
    %1143 = vmatpush1.xpose.msra.mxu0 0.0
    %1144 = vmatprep.subr.mxu0 0.0
    %1145 = vmatpush1.xpose.msra.mxu0 0.0
    %1146 = vmatprep.subr.mxu0 0.0
    %1147 = vmatpush1.xpose.msra.mxu0 0.0
    %1148 = vmatprep.subr.mxu0 0.0
    %1149 = vmatpush1.xpose.msra.mxu0 0.0
    %1150 = vmatprep.subr.mxu0 0.0
    %1151 = vmatpush1.xpose.msra.mxu0 0.0
    %1152 = vmatprep.subr.mxu0 0.0
    %1153 = vmatpush1.xpose.msra.mxu0 0.0
    %1154 = vmatprep.subr.mxu0 0.0
    %1155 = vmatpush1.xpose.msra.mxu0 0.0
    %1156 = vmatprep.subr.mxu0 0.0
    %1157 = vmatpush1.xpose.msra.mxu0 0.0
    %1158 = vmatprep.subr.mxu0 0.0
    %1159 = vmatpush1.xpose.msra.mxu0 0.0
    %1160 = vmatprep.subr.mxu0 0.0
    %1161 = vmatpush1.xpose.msra.mxu0 0.0
    %1162 = vmatprep.subr.mxu0 0.0
    %1163 = vmatpush1.xpose.msra.mxu0 0.0
    %1164 = vmatprep.subr.mxu0 0.0
    %1165 = vmatpush1.xpose.msra.mxu0 0.0
    %1166 = vmatprep.subr.mxu0 0.0
    %1167 = vmatpush1.xpose.msra.mxu0 0.0
    %1168 = vmatprep.subr.mxu0 0.0
    %1169 = vmatpush1.xpose.msra.mxu0 0.0
    %1170 = vmatprep.subr.mxu0 0.0
    %1171 = vmatpush1.xpose.msra.mxu0 0.0
    %1172 = vmatprep.subr.mxu0 0.0
    %1173 = vmatpush1.xpose.msra.mxu0 0.0
    %1174 = vmatprep.subr.mxu0 0.0
    %1175 = vmatpush1.xpose.msra.mxu0 0.0
    %1176 = vmatprep.subr.mxu0 0.0
    %1177 = vmatpush1.xpose.msra.mxu0 0.0
    %1178 = vmatprep.subr.mxu0 0.0
    %1179 = vmatpush1.xpose.msra.mxu0 0.0
    %1180 = vmatprep.subr.mxu0 0.0
    %1181 = vmatpush1.xpose.msra.mxu0 0.0
    %1182 = vmatprep.subr.mxu0 0.0
    %1183 = vmatpush1.xpose.msra.mxu0 0.0
    %1184 = vmatprep.subr.mxu0 0.0
    %1185 = vmatpush1.xpose.msra.mxu0 0.0
    %1186 = vmatprep.subr.mxu0 0.0
    %1187 = vmatpush1.xpose.msra.mxu0 0.0
    %1188 = vmatprep.subr.mxu0 0.0
    %1189 = vmatpush1.xpose.msra.mxu0 0.0
    %1190 = vmatprep.subr.mxu0 0.0
    %1191 = vmatpush1.xpose.msra.mxu0 0.0
    %1192 = vmatprep.subr.mxu0 0.0
    %1193 = vmatpush1.xpose.msra.mxu0 0.0
    %1194 = vmatprep.subr.mxu0 0.0
    %1195 = vmatpush1.xpose.msra.mxu0 0.0
    %1196 = vmatprep.subr.mxu0 0.0
    %1197 = vmatpush1.xpose.msra.mxu0 0.0
    %1198 = vmatprep.subr.mxu0 0.0
    %1199 = vmatpush1.xpose.msra.mxu0 0.0
    %1200 = vmatprep.subr.mxu0 0.0
    %1201 = vmatpush1.xpose.msra.mxu0 0.0
    %1202 = vmatprep.mubr.f32.mxu0 0.0
    %1203 = vmatmul.mubr.f32.gmra.mrb[0].mxu0 %v1134
    %v1204 = vpop.f32.mrb[0].mxu0
    %v1205 = vadd.f32 %v1130, %v1204
    %v1206 = vpop.f32.mrb[0].mxu0
    %1207 = vdwg.mxu0
    %v1208 = vsel %vm210, %v1205, -inf
    %1209 = vmax.xlane.f32.xlu0 %v1208
    %v1210 = vpop.xlane.xlu0 %1209
    %v1211 = vsub.f32 %v1205, %v1210
    %v1212 = vmul.f32 %v1211, 1.442695
    %v1213 = vpow.pop %v1212
    %v1214 = vsel %vm210, %v1213, 0.0
    %1215 = vadd.xlane.f32.xlu0 %v1214
    %v1216 = vpop.xlane.xlu0 %1215
    %v1217 = vrcp.pop %v1216
    %v1218 = vmul.f32 %v1213, %v1217
    %v1220 = vsel %vm210, %v1218, 0
    %1222 = vmatprep.subr.mxu0 0.0
    %1223 = vmatpush1.msra.mxu0 %v122
    %1224 = vmatprep.subr.mxu0 0.0
    %1225 = vmatpush1.msra.mxu0 0.0
    %1226 = vmatprep.subr.mxu0 0.0
    %1227 = vmatpush1.msra.mxu0 0.0
    %1228 = vmatprep.subr.mxu0 0.0
    %1229 = vmatpush1.msra.mxu0 0.0
    %1230 = vmatprep.subr.mxu0 0.0
    %1231 = vmatpush1.msra.mxu0 0.0
    %1232 = vmatprep.subr.mxu0 0.0
    %1233 = vmatpush1.msra.mxu0 0.0
    %1234 = vmatprep.subr.mxu0 0.0
    %1235 = vmatpush1.msra.mxu0 0.0
    %1236 = vmatprep.subr.mxu0 0.0
    %1237 = vmatpush1.msra.mxu0 0.0
    %1238 = vmatprep.subr.mxu0 0.0
    %1239 = vmatpush1.msra.mxu0 0.0
    %1240 = vmatprep.subr.mxu0 0.0
    %1241 = vmatpush1.msra.mxu0 0.0
    %1242 = vmatprep.subr.mxu0 0.0
    %1243 = vmatpush1.msra.mxu0 0.0
    %1244 = vmatprep.subr.mxu0 0.0
    %1245 = vmatpush1.msra.mxu0 0.0
    %1246 = vmatprep.subr.mxu0 0.0
    %1247 = vmatpush1.msra.mxu0 0.0
    %1248 = vmatprep.subr.mxu0 0.0
    %1249 = vmatpush1.msra.mxu0 0.0
    %1250 = vmatprep.subr.mxu0 0.0
    %1251 = vmatpush1.msra.mxu0 0.0
    %1252 = vmatprep.subr.mxu0 0.0
    %1253 = vmatpush1.msra.mxu0 0.0
    %1254 = vmatprep.subr.mxu0 0.0
    %1255 = vmatpush1.msra.mxu0 0.0
    %1256 = vmatprep.subr.mxu0 0.0
    %1257 = vmatpush1.msra.mxu0 0.0
    %1258 = vmatprep.subr.mxu0 0.0
    %1259 = vmatpush1.msra.mxu0 0.0
    %1260 = vmatprep.subr.mxu0 0.0
    %1261 = vmatpush1.msra.mxu0 0.0
    %1262 = vmatprep.subr.mxu0 0.0
    %1263 = vmatpush1.msra.mxu0 0.0
    %1264 = vmatprep.subr.mxu0 0.0
    %1265 = vmatpush1.msra.mxu0 0.0
    %1266 = vmatprep.subr.mxu0 0.0
    %1267 = vmatpush1.msra.mxu0 0.0
    %1268 = vmatprep.subr.mxu0 0.0
    %1269 = vmatpush1.msra.mxu0 0.0
    %1270 = vmatprep.subr.mxu0 0.0
    %1271 = vmatpush1.msra.mxu0 0.0
    %1272 = vmatprep.subr.mxu0 0.0
    %1273 = vmatpush1.msra.mxu0 0.0
    %1274 = vmatprep.subr.mxu0 0.0
    %1275 = vmatpush1.msra.mxu0 0.0
    %1276 = vmatprep.subr.mxu0 0.0
    %1277 = vmatpush1.msra.mxu0 0.0
    %1278 = vmatprep.subr.mxu0 0.0
    %1279 = vmatpush1.msra.mxu0 0.0
    %1280 = vmatprep.subr.mxu0 0.0
    %1281 = vmatpush1.msra.mxu0 0.0
    %1282 = vmatprep.subr.mxu0 0.0
    %1283 = vmatpush1.msra.mxu0 0.0
    %1284 = vmatprep.subr.mxu0 0.0
    %1285 = vmatpush1.msra.mxu0 0.0
    %1286 = vmatprep.mubr.f32.mxu0 0.0
    %1287 = vmatmul.mubr.f32.gmra.mrb[0].mxu0 %v1220
    %v1288 = vpop.f32.mrb[0].mxu0
    %v1289 = vadd.f32 0.0, %v1288
    %v1290 = vpop.f32.mrb[0].mxu0
    %1291 = vdwg.mxu0
    %v1292 = vld [vmem:[%s3] sm:$0xff]
    %v1293 = vld [vmem:[%s3 + $0x8] sm:$0xff]
    %1294 = vrot.lane.b32.xlu0 %v120, 112
    %v1295 = vpop.permute.xlu0 %1294
    %1296 = vrot.lane.b32.xlu0 %v120, 48
    %v1297 = vpop.permute.xlu0 %1296
    %v1298 = vsel %vm135, %v1295, 0
    %v1300 = vsel %vm135, %v1297, 0
    %1302 = vmatprep.subr.mxu0 0.0
    %1303 = vmatpush1.xpose.msra.mxu0 %v1300
    %1304 = vmatprep.subr.mxu0 0.0
    %1305 = vmatpush1.xpose.msra.mxu0 0.0
    %1306 = vmatprep.subr.mxu0 0.0
    %1307 = vmatpush1.xpose.msra.mxu0 0.0
    %1308 = vmatprep.subr.mxu0 0.0
    %1309 = vmatpush1.xpose.msra.mxu0 0.0
    %1310 = vmatprep.subr.mxu0 0.0
    %1311 = vmatpush1.xpose.msra.mxu0 0.0
    %1312 = vmatprep.subr.mxu0 0.0
    %1313 = vmatpush1.xpose.msra.mxu0 0.0
    %1314 = vmatprep.subr.mxu0 0.0
    %1315 = vmatpush1.xpose.msra.mxu0 0.0
    %1316 = vmatprep.subr.mxu0 0.0
    %1317 = vmatpush1.xpose.msra.mxu0 0.0
    %1318 = vmatprep.subr.mxu0 0.0
    %1319 = vmatpush1.xpose.msra.mxu0 0.0
    %1320 = vmatprep.subr.mxu0 0.0
    %1321 = vmatpush1.xpose.msra.mxu0 0.0
    %1322 = vmatprep.subr.mxu0 0.0
    %1323 = vmatpush1.xpose.msra.mxu0 0.0
    %1324 = vmatprep.subr.mxu0 0.0
    %1325 = vmatpush1.xpose.msra.mxu0 0.0
    %1326 = vmatprep.subr.mxu0 0.0
    %1327 = vmatpush1.xpose.msra.mxu0 0.0
    %1328 = vmatprep.subr.mxu0 0.0
    %1329 = vmatpush1.xpose.msra.mxu0 0.0
    %1330 = vmatprep.subr.mxu0 0.0
    %1331 = vmatpush1.xpose.msra.mxu0 0.0
    %1332 = vmatprep.subr.mxu0 0.0
    %1333 = vmatpush1.xpose.msra.mxu0 0.0
    %1334 = vmatprep.subr.mxu0 0.0
    %1335 = vmatpush1.xpose.msra.mxu0 0.0
    %1336 = vmatprep.subr.mxu0 0.0
    %1337 = vmatpush1.xpose.msra.mxu0 0.0
    %1338 = vmatprep.subr.mxu0 0.0
    %1339 = vmatpush1.xpose.msra.mxu0 0.0
    %1340 = vmatprep.subr.mxu0 0.0
    %1341 = vmatpush1.xpose.msra.mxu0 0.0
    %1342 = vmatprep.subr.mxu0 0.0
    %1343 = vmatpush1.xpose.msra.mxu0 0.0
    %1344 = vmatprep.subr.mxu0 0.0
    %1345 = vmatpush1.xpose.msra.mxu0 0.0
    %1346 = vmatprep.subr.mxu0 0.0
    %1347 = vmatpush1.xpose.msra.mxu0 0.0
    %1348 = vmatprep.subr.mxu0 0.0
    %1349 = vmatpush1.xpose.msra.mxu0 0.0
    %1350 = vmatprep.subr.mxu0 0.0
    %1351 = vmatpush1.xpose.msra.mxu0 0.0
    %1352 = vmatprep.subr.mxu0 0.0
    %1353 = vmatpush1.xpose.msra.mxu0 0.0
    %1354 = vmatprep.subr.mxu0 0.0
    %1355 = vmatpush1.xpose.msra.mxu0 0.0
    %1356 = vmatprep.subr.mxu0 0.0
    %1357 = vmatpush1.xpose.msra.mxu0 0.0
    %1358 = vmatprep.subr.mxu0 0.0
    %1359 = vmatpush1.xpose.msra.mxu0 0.0
    %1360 = vmatprep.subr.mxu0 0.0
    %1361 = vmatpush1.xpose.msra.mxu0 0.0
    %1362 = vmatprep.subr.mxu0 0.0
    %1363 = vmatpush1.xpose.msra.mxu0 0.0
    %1364 = vmatprep.subr.mxu0 0.0
    %1365 = vmatpush1.xpose.msra.mxu0 0.0
    %1366 = vmatprep.mubr.f32.mxu0 0.0
    %1367 = vmatmul.mubr.f32.gmra.mrb[0].mxu0 %v1298
    %v1368 = vpop.f32.mrb[0].mxu0
    %v1369 = vadd.f32 %v1130, %v1368
    %v1370 = vpop.f32.mrb[0].mxu0
    %1371 = vdwg.mxu0
    %v1372 = vsel %vm210, %v1369, -inf
    %1373 = vmax.xlane.f32.xlu0 %v1372
    %v1374 = vpop.xlane.xlu0 %1373
    %v1375 = vsub.f32 %v1369, %v1374
    %v1376 = vmul.f32 %v1375, 1.442695
    %v1377 = vpow.pop %v1376
    %v1378 = vsel %vm210, %v1377, 0.0
    %1379 = vadd.xlane.f32.xlu0 %v1378
    %v1380 = vpop.xlane.xlu0 %1379
    %v1381 = vrcp.pop %v1380
    %v1382 = vmul.f32 %v1377, %v1381
    %1384 = vrot.lane.b32.xlu0 %v122, 112
    %v1385 = vpop.permute.xlu0 %1384
    %v1388 = vsel %vm210, %v1382, 0
    %1390 = vmatprep.subr.mxu0 0.0
    %1391 = vmatpush1.msra.mxu0 %v1385
    %1392 = vmatprep.subr.mxu0 0.0
    %1393 = vmatpush1.msra.mxu0 0.0
    %1394 = vmatprep.subr.mxu0 0.0
    %1395 = vmatpush1.msra.mxu0 0.0
    %1396 = vmatprep.subr.mxu0 0.0
    %1397 = vmatpush1.msra.mxu0 0.0
    %1398 = vmatprep.subr.mxu0 0.0
    %1399 = vmatpush1.msra.mxu0 0.0
    %1400 = vmatprep.subr.mxu0 0.0
    %1401 = vmatpush1.msra.mxu0 0.0
    %1402 = vmatprep.subr.mxu0 0.0
    %1403 = vmatpush1.msra.mxu0 0.0
    %1404 = vmatprep.subr.mxu0 0.0
    %1405 = vmatpush1.msra.mxu0 0.0
    %1406 = vmatprep.subr.mxu0 0.0
    %1407 = vmatpush1.msra.mxu0 0.0
    %1408 = vmatprep.subr.mxu0 0.0
    %1409 = vmatpush1.msra.mxu0 0.0
    %1410 = vmatprep.subr.mxu0 0.0
    %1411 = vmatpush1.msra.mxu0 0.0
    %1412 = vmatprep.subr.mxu0 0.0
    %1413 = vmatpush1.msra.mxu0 0.0
    %1414 = vmatprep.subr.mxu0 0.0
    %1415 = vmatpush1.msra.mxu0 0.0
    %1416 = vmatprep.subr.mxu0 0.0
    %1417 = vmatpush1.msra.mxu0 0.0
    %1418 = vmatprep.subr.mxu0 0.0
    %1419 = vmatpush1.msra.mxu0 0.0
    %1420 = vmatprep.subr.mxu0 0.0
    %1421 = vmatpush1.msra.mxu0 0.0
    %1422 = vmatprep.subr.mxu0 0.0
    %1423 = vmatpush1.msra.mxu0 0.0
    %1424 = vmatprep.subr.mxu0 0.0
    %1425 = vmatpush1.msra.mxu0 0.0
    %1426 = vmatprep.subr.mxu0 0.0
    %1427 = vmatpush1.msra.mxu0 0.0
    %1428 = vmatprep.subr.mxu0 0.0
    %1429 = vmatpush1.msra.mxu0 0.0
    %1430 = vmatprep.subr.mxu0 0.0
    %1431 = vmatpush1.msra.mxu0 0.0
    %1432 = vmatprep.subr.mxu0 0.0
    %1433 = vmatpush1.msra.mxu0 0.0
    %1434 = vmatprep.subr.mxu0 0.0
    %1435 = vmatpush1.msra.mxu0 0.0
    %1436 = vmatprep.subr.mxu0 0.0
    %1437 = vmatpush1.msra.mxu0 0.0
    %1438 = vmatprep.subr.mxu0 0.0
    %1439 = vmatpush1.msra.mxu0 0.0
    %1440 = vmatprep.subr.mxu0 0.0
    %1441 = vmatpush1.msra.mxu0 0.0
    %1442 = vmatprep.subr.mxu0 0.0
    %1443 = vmatpush1.msra.mxu0 0.0
    %1444 = vmatprep.subr.mxu0 0.0
    %1445 = vmatpush1.msra.mxu0 0.0
    %1446 = vmatprep.subr.mxu0 0.0
    %1447 = vmatpush1.msra.mxu0 0.0
    %1448 = vmatprep.subr.mxu0 0.0
    %1449 = vmatpush1.msra.mxu0 0.0
    %1450 = vmatprep.subr.mxu0 0.0
    %1451 = vmatpush1.msra.mxu0 0.0
    %1452 = vmatprep.subr.mxu0 0.0
    %1453 = vmatpush1.msra.mxu0 0.0
    %1454 = vmatprep.mubr.f32.mxu0 0.0
    %1455 = vmatmul.mubr.f32.gmra.mrb[0].mxu0 %v1388
    %v1456 = vpop.f32.mrb[0].mxu0
    %v1457 = vadd.f32 0.0, %v1456
    %v1458 = vpop.f32.mrb[0].mxu0
    %1459 = vdwg.mxu0
    %v1460 = vld [vmem:[%s3 + $0x10] sm:$0xff]
    %v1461 = vld [vmem:[%s3 + $0x18] sm:$0xff]
    %v1463 = vsel %vm135, %v1457, 0
    %1465 = vmatprep.subr.mxu0 0.0
    %1466 = vmatpush1.msra.mxu0 %v1460
    %1467 = vmatprep.subr.mxu0 0.0
    %1468 = vmatpush1.msra.mxu0 %v1461
    %1469 = vmatprep.subr.mxu0 0.0
    %1470 = vmatpush1.msra.mxu0 0.0
    %1471 = vmatprep.subr.mxu0 0.0
    %1472 = vmatpush1.msra.mxu0 0.0
    %1473 = vmatprep.subr.mxu0 0.0
    %1474 = vmatpush1.msra.mxu0 0.0
    %1475 = vmatprep.subr.mxu0 0.0
    %1476 = vmatpush1.msra.mxu0 0.0
    %1477 = vmatprep.subr.mxu0 0.0
    %1478 = vmatpush1.msra.mxu0 0.0
    %1479 = vmatprep.subr.mxu0 0.0
    %1480 = vmatpush1.msra.mxu0 0.0
    %1481 = vmatprep.subr.mxu0 0.0
    %1482 = vmatpush1.msra.mxu0 0.0
    %1483 = vmatprep.subr.mxu0 0.0
    %1484 = vmatpush1.msra.mxu0 0.0
    %1485 = vmatprep.subr.mxu0 0.0
    %1486 = vmatpush1.msra.mxu0 0.0
    %1487 = vmatprep.subr.mxu0 0.0
    %1488 = vmatpush1.msra.mxu0 0.0
    %1489 = vmatprep.subr.mxu0 0.0
    %1490 = vmatpush1.msra.mxu0 0.0
    %1491 = vmatprep.subr.mxu0 0.0
    %1492 = vmatpush1.msra.mxu0 0.0
    %1493 = vmatprep.subr.mxu0 0.0
    %1494 = vmatpush1.msra.mxu0 0.0
    %1495 = vmatprep.subr.mxu0 0.0
    %1496 = vmatpush1.msra.mxu0 0.0
    %1497 = vmatprep.subr.mxu0 0.0
    %1498 = vmatpush1.msra.mxu0 0.0
    %1499 = vmatprep.subr.mxu0 0.0
    %1500 = vmatpush1.msra.mxu0 0.0
    %1501 = vmatprep.subr.mxu0 0.0
    %1502 = vmatpush1.msra.mxu0 0.0
    %1503 = vmatprep.subr.mxu0 0.0
    %1504 = vmatpush1.msra.mxu0 0.0
    %1505 = vmatprep.subr.mxu0 0.0
    %1506 = vmatpush1.msra.mxu0 0.0
    %1507 = vmatprep.subr.mxu0 0.0
    %1508 = vmatpush1.msra.mxu0 0.0
    %1509 = vmatprep.subr.mxu0 0.0
    %1510 = vmatpush1.msra.mxu0 0.0
    %1511 = vmatprep.subr.mxu0 0.0
    %1512 = vmatpush1.msra.mxu0 0.0
    %1513 = vmatprep.subr.mxu0 0.0
    %1514 = vmatpush1.msra.mxu0 0.0
    %1515 = vmatprep.subr.mxu0 0.0
    %1516 = vmatpush1.msra.mxu0 0.0
    %1517 = vmatprep.subr.mxu0 0.0
    %1518 = vmatpush1.msra.mxu0 0.0
    %1519 = vmatprep.subr.mxu0 0.0
    %1520 = vmatpush1.msra.mxu0 0.0
    %1521 = vmatprep.subr.mxu0 0.0
    %1522 = vmatpush1.msra.mxu0 0.0
    %1523 = vmatprep.subr.mxu0 0.0
    %1524 = vmatpush1.msra.mxu0 0.0
    %1525 = vmatprep.subr.mxu0 0.0
    %1526 = vmatpush1.msra.mxu0 0.0
    %1527 = vmatprep.subr.mxu0 0.0
    %1528 = vmatpush1.msra.mxu0 0.0
    %1529 = vmatprep.mubr.f32.mxu0 0.0
    %1530 = vmatmul.mubr.f32.gmra.mrb[0].mxu0 %v1463
    %v1531 = vpop.f32.mrb[0].mxu0
    %v1532 = vadd.f32 0.0, %v1531
    %v1533 = vpop.f32.mrb[0].mxu0
    %1534 = vdwg.mxu0
    %v1536 = vsel %vm135, %v1289, 0
    %1538 = vmatprep.subr.mxu0 0.0
    %1539 = vmatpush1.msra.mxu0 %v1292
    %1540 = vmatprep.subr.mxu0 0.0
    %1541 = vmatpush1.msra.mxu0 %v1293
    %1542 = vmatprep.subr.mxu0 0.0
    %1543 = vmatpush1.msra.mxu0 0.0
    %1544 = vmatprep.subr.mxu0 0.0
    %1545 = vmatpush1.msra.mxu0 0.0
    %1546 = vmatprep.subr.mxu0 0.0
    %1547 = vmatpush1.msra.mxu0 0.0
    %1548 = vmatprep.subr.mxu0 0.0
    %1549 = vmatpush1.msra.mxu0 0.0
    %1550 = vmatprep.subr.mxu0 0.0
    %1551 = vmatpush1.msra.mxu0 0.0
    %1552 = vmatprep.subr.mxu0 0.0
    %1553 = vmatpush1.msra.mxu0 0.0
    %1554 = vmatprep.subr.mxu0 0.0
    %1555 = vmatpush1.msra.mxu0 0.0
    %1556 = vmatprep.subr.mxu0 0.0
    %1557 = vmatpush1.msra.mxu0 0.0
    %1558 = vmatprep.subr.mxu0 0.0
    %1559 = vmatpush1.msra.mxu0 0.0
    %1560 = vmatprep.subr.mxu0 0.0
    %1561 = vmatpush1.msra.mxu0 0.0
    %1562 = vmatprep.subr.mxu0 0.0
    %1563 = vmatpush1.msra.mxu0 0.0
    %1564 = vmatprep.subr.mxu0 0.0
    %1565 = vmatpush1.msra.mxu0 0.0
    %1566 = vmatprep.subr.mxu0 0.0
    %1567 = vmatpush1.msra.mxu0 0.0
    %1568 = vmatprep.subr.mxu0 0.0
    %1569 = vmatpush1.msra.mxu0 0.0
    %1570 = vmatprep.subr.mxu0 0.0
    %1571 = vmatpush1.msra.mxu0 0.0
    %1572 = vmatprep.subr.mxu0 0.0
    %1573 = vmatpush1.msra.mxu0 0.0
    %1574 = vmatprep.subr.mxu0 0.0
    %1575 = vmatpush1.msra.mxu0 0.0
    %1576 = vmatprep.subr.mxu0 0.0
    %1577 = vmatpush1.msra.mxu0 0.0
    %1578 = vmatprep.subr.mxu0 0.0
    %1579 = vmatpush1.msra.mxu0 0.0
    %1580 = vmatprep.subr.mxu0 0.0
    %1581 = vmatpush1.msra.mxu0 0.0
    %1582 = vmatprep.subr.mxu0 0.0
    %1583 = vmatpush1.msra.mxu0 0.0
    %1584 = vmatprep.subr.mxu0 0.0
    %1585 = vmatpush1.msra.mxu0 0.0
    %1586 = vmatprep.subr.mxu0 0.0
    %1587 = vmatpush1.msra.mxu0 0.0
    %1588 = vmatprep.subr.mxu0 0.0
    %1589 = vmatpush1.msra.mxu0 0.0
    %1590 = vmatprep.subr.mxu0 0.0
    %1591 = vmatpush1.msra.mxu0 0.0
    %1592 = vmatprep.subr.mxu0 0.0
    %1593 = vmatpush1.msra.mxu0 0.0
    %1594 = vmatprep.subr.mxu0 0.0
    %1595 = vmatpush1.msra.mxu0 0.0
    %1596 = vmatprep.subr.mxu0 0.0
    %1597 = vmatpush1.msra.mxu0 0.0
    %1598 = vmatprep.subr.mxu0 0.0
    %1599 = vmatpush1.msra.mxu0 0.0
    %1600 = vmatprep.subr.mxu0 0.0
    %1601 = vmatpush1.msra.mxu0 0.0
    %1602 = vmatprep.mubr.f32.mxu0 0.0
    %1603 = vmatmul.mubr.f32.gmra.mrb[0].mxu0 %v1536
    %v1604 = vpop.f32.mrb[0].mxu0
    %v1605 = vadd.f32 %v1532, %v1604
    %v1606 = vpop.f32.mrb[0].mxu0
    %1607 = vdwg.mxu0
    %1608 = vrot.lane.b32.xlu0 %v120, 96
    %v1609 = vpop.permute.xlu0 %1608
    %1610 = vrot.lane.b32.xlu0 %v120, 32
    %v1611 = vpop.permute.xlu0 %1610
    %v1612 = vsel %vm135, %v1609, 0
    %v1614 = vsel %vm135, %v1611, 0
    %1616 = vmatprep.subr.mxu0 0.0
    %1617 = vmatpush1.xpose.msra.mxu0 %v1614
    %1618 = vmatprep.subr.mxu0 0.0
    %1619 = vmatpush1.xpose.msra.mxu0 0.0
    %1620 = vmatprep.subr.mxu0 0.0
    %1621 = vmatpush1.xpose.msra.mxu0 0.0
    %1622 = vmatprep.subr.mxu0 0.0
    %1623 = vmatpush1.xpose.msra.mxu0 0.0
    %1624 = vmatprep.subr.mxu0 0.0
    %1625 = vmatpush1.xpose.msra.mxu0 0.0
    %1626 = vmatprep.subr.mxu0 0.0
    %1627 = vmatpush1.xpose.msra.mxu0 0.0
    %1628 = vmatprep.subr.mxu0 0.0
    %1629 = vmatpush1.xpose.msra.mxu0 0.0
    %1630 = vmatprep.subr.mxu0 0.0
    %1631 = vmatpush1.xpose.msra.mxu0 0.0
    %1632 = vmatprep.subr.mxu0 0.0
    %1633 = vmatpush1.xpose.msra.mxu0 0.0
    %1634 = vmatprep.subr.mxu0 0.0
    %1635 = vmatpush1.xpose.msra.mxu0 0.0
    %1636 = vmatprep.subr.mxu0 0.0
    %1637 = vmatpush1.xpose.msra.mxu0 0.0
    %1638 = vmatprep.subr.mxu0 0.0
    %1639 = vmatpush1.xpose.msra.mxu0 0.0
    %1640 = vmatprep.subr.mxu0 0.0
    %1641 = vmatpush1.xpose.msra.mxu0 0.0
    %1642 = vmatprep.subr.mxu0 0.0
    %1643 = vmatpush1.xpose.msra.mxu0 0.0
    %1644 = vmatprep.subr.mxu0 0.0
    %1645 = vmatpush1.xpose.msra.mxu0 0.0
    %1646 = vmatprep.subr.mxu0 0.0
    %1647 = vmatpush1.xpose.msra.mxu0 0.0
    %1648 = vmatprep.subr.mxu0 0.0
    %1649 = vmatpush1.xpose.msra.mxu0 0.0
    %1650 = vmatprep.subr.mxu0 0.0
    %1651 = vmatpush1.xpose.msra.mxu0 0.0
    %1652 = vmatprep.subr.mxu0 0.0
    %1653 = vmatpush1.xpose.msra.mxu0 0.0
    %1654 = vmatprep.subr.mxu0 0.0
    %1655 = vmatpush1.xpose.msra.mxu0 0.0
    %1656 = vmatprep.subr.mxu0 0.0
    %1657 = vmatpush1.xpose.msra.mxu0 0.0
    %1658 = vmatprep.subr.mxu0 0.0
    %1659 = vmatpush1.xpose.msra.mxu0 0.0
    %1660 = vmatprep.subr.mxu0 0.0
    %1661 = vmatpush1.xpose.msra.mxu0 0.0
    %1662 = vmatprep.subr.mxu0 0.0
    %1663 = vmatpush1.xpose.msra.mxu0 0.0
    %1664 = vmatprep.subr.mxu0 0.0
    %1665 = vmatpush1.xpose.msra.mxu0 0.0
    %1666 = vmatprep.subr.mxu0 0.0
    %1667 = vmatpush1.xpose.msra.mxu0 0.0
    %1668 = vmatprep.subr.mxu0 0.0
    %1669 = vmatpush1.xpose.msra.mxu0 0.0
    %1670 = vmatprep.subr.mxu0 0.0
    %1671 = vmatpush1.xpose.msra.mxu0 0.0
    %1672 = vmatprep.subr.mxu0 0.0
    %1673 = vmatpush1.xpose.msra.mxu0 0.0
    %1674 = vmatprep.subr.mxu0 0.0
    %1675 = vmatpush1.xpose.msra.mxu0 0.0
    %1676 = vmatprep.subr.mxu0 0.0
    %1677 = vmatpush1.xpose.msra.mxu0 0.0
    %1678 = vmatprep.subr.mxu0 0.0
    %1679 = vmatpush1.xpose.msra.mxu0 0.0
    %1680 = vmatprep.mubr.f32.mxu0 0.0
    %1681 = vmatmul.mubr.f32.gmra.mrb[0].mxu0 %v1612
    %v1682 = vpop.f32.mrb[0].mxu0
    %v1683 = vadd.f32 %v1130, %v1682
    %v1684 = vpop.f32.mrb[0].mxu0
    %1685 = vdwg.mxu0
    %v1686 = vsel %vm210, %v1683, -inf
    %1687 = vmax.xlane.f32.xlu0 %v1686
    %v1688 = vpop.xlane.xlu0 %1687
    %v1689 = vsub.f32 %v1683, %v1688
    %v1690 = vmul.f32 %v1689, 1.442695
    %v1691 = vpow.pop %v1690
    %v1692 = vsel %vm210, %v1691, 0.0
    %1693 = vadd.xlane.f32.xlu0 %v1692
    %v1694 = vpop.xlane.xlu0 %1693
    %v1695 = vrcp.pop %v1694
    %v1696 = vmul.f32 %v1691, %v1695
    %1697 = vrot.lane.b32.xlu0 %v122, 96
    %v1698 = vpop.permute.xlu0 %1697
    %v1701 = vsel %vm210, %v1696, 0
    %1703 = vmatprep.subr.mxu0 0.0
    %1704 = vmatpush1.msra.mxu0 %v1698
    %1705 = vmatprep.subr.mxu0 0.0
    %1706 = vmatpush1.msra.mxu0 0.0
    %1707 = vmatprep.subr.mxu0 0.0
    %1708 = vmatpush1.msra.mxu0 0.0
    %1709 = vmatprep.subr.mxu0 0.0
    %1710 = vmatpush1.msra.mxu0 0.0
    %1711 = vmatprep.subr.mxu0 0.0
    %1712 = vmatpush1.msra.mxu0 0.0
    %1713 = vmatprep.subr.mxu0 0.0
    %1714 = vmatpush1.msra.mxu0 0.0
    %1715 = vmatprep.subr.mxu0 0.0
    %1716 = vmatpush1.msra.mxu0 0.0
    %1717 = vmatprep.subr.mxu0 0.0
    %1718 = vmatpush1.msra.mxu0 0.0
    %1719 = vmatprep.subr.mxu0 0.0
    %1720 = vmatpush1.msra.mxu0 0.0
    %1721 = vmatprep.subr.mxu0 0.0
    %1722 = vmatpush1.msra.mxu0 0.0
    %1723 = vmatprep.subr.mxu0 0.0
    %1724 = vmatpush1.msra.mxu0 0.0
    %1725 = vmatprep.subr.mxu0 0.0
    %1726 = vmatpush1.msra.mxu0 0.0
    %1727 = vmatprep.subr.mxu0 0.0
    %1728 = vmatpush1.msra.mxu0 0.0
    %1729 = vmatprep.subr.mxu0 0.0
    %1730 = vmatpush1.msra.mxu0 0.0
    %1731 = vmatprep.subr.mxu0 0.0
    %1732 = vmatpush1.msra.mxu0 0.0
    %1733 = vmatprep.subr.mxu0 0.0
    %1734 = vmatpush1.msra.mxu0 0.0
    %1735 = vmatprep.subr.mxu0 0.0
    %1736 = vmatpush1.msra.mxu0 0.0
    %1737 = vmatprep.subr.mxu0 0.0
    %1738 = vmatpush1.msra.mxu0 0.0
    %1739 = vmatprep.subr.mxu0 0.0
    %1740 = vmatpush1.msra.mxu0 0.0
    %1741 = vmatprep.subr.mxu0 0.0
    %1742 = vmatpush1.msra.mxu0 0.0
    %1743 = vmatprep.subr.mxu0 0.0
    %1744 = vmatpush1.msra.mxu0 0.0
    %1745 = vmatprep.subr.mxu0 0.0
    %1746 = vmatpush1.msra.mxu0 0.0
    %1747 = vmatprep.subr.mxu0 0.0
    %1748 = vmatpush1.msra.mxu0 0.0
    %1749 = vmatprep.subr.mxu0 0.0
    %1750 = vmatpush1.msra.mxu0 0.0
    %1751 = vmatprep.subr.mxu0 0.0
    %1752 = vmatpush1.msra.mxu0 0.0
    %1753 = vmatprep.subr.mxu0 0.0
    %1754 = vmatpush1.msra.mxu0 0.0
    %1755 = vmatprep.subr.mxu0 0.0
    %1756 = vmatpush1.msra.mxu0 0.0
    %1757 = vmatprep.subr.mxu0 0.0
    %1758 = vmatpush1.msra.mxu0 0.0
    %1759 = vmatprep.subr.mxu0 0.0
    %1760 = vmatpush1.msra.mxu0 0.0
    %1761 = vmatprep.subr.mxu0 0.0
    %1762 = vmatpush1.msra.mxu0 0.0
    %1763 = vmatprep.subr.mxu0 0.0
    %1764 = vmatpush1.msra.mxu0 0.0
    %1765 = vmatprep.subr.mxu0 0.0
    %1766 = vmatpush1.msra.mxu0 0.0
    %1767 = vmatprep.mubr.f32.mxu0 0.0
    %1768 = vmatmul.mubr.f32.gmra.mrb[0].mxu0 %v1701
    %v1769 = vpop.f32.mrb[0].mxu0
    %v1770 = vadd.f32 0.0, %v1769
    %v1771 = vpop.f32.mrb[0].mxu0
    %1772 = vdwg.mxu0
    %v1773 = vld [vmem:[%s3 + $0x20] sm:$0xff]
    %v1774 = vld [vmem:[%s3 + $0x28] sm:$0xff]
    %v1776 = vsel %vm135, %v1770, 0
    %1778 = vmatprep.subr.mxu0 0.0
    %1779 = vmatpush1.msra.mxu0 %v1773
    %1780 = vmatprep.subr.mxu0 0.0
    %1781 = vmatpush1.msra.mxu0 %v1774
    %1782 = vmatprep.subr.mxu0 0.0
    %1783 = vmatpush1.msra.mxu0 0.0
    %1784 = vmatprep.subr.mxu0 0.0
    %1785 = vmatpush1.msra.mxu0 0.0
    %1786 = vmatprep.subr.mxu0 0.0
    %1787 = vmatpush1.msra.mxu0 0.0
    %1788 = vmatprep.subr.mxu0 0.0
    %1789 = vmatpush1.msra.mxu0 0.0
    %1790 = vmatprep.subr.mxu0 0.0
    %1791 = vmatpush1.msra.mxu0 0.0
    %1792 = vmatprep.subr.mxu0 0.0
    %1793 = vmatpush1.msra.mxu0 0.0
    %1794 = vmatprep.subr.mxu0 0.0
    %1795 = vmatpush1.msra.mxu0 0.0
    %1796 = vmatprep.subr.mxu0 0.0
    %1797 = vmatpush1.msra.mxu0 0.0
    %1798 = vmatprep.subr.mxu0 0.0
    %1799 = vmatpush1.msra.mxu0 0.0
    %1800 = vmatprep.subr.mxu0 0.0
    %1801 = vmatpush1.msra.mxu0 0.0
    %1802 = vmatprep.subr.mxu0 0.0
    %1803 = vmatpush1.msra.mxu0 0.0
    %1804 = vmatprep.subr.mxu0 0.0
    %1805 = vmatpush1.msra.mxu0 0.0
    %1806 = vmatprep.subr.mxu0 0.0
    %1807 = vmatpush1.msra.mxu0 0.0
    %1808 = vmatprep.subr.mxu0 0.0
    %1809 = vmatpush1.msra.mxu0 0.0
    %1810 = vmatprep.subr.mxu0 0.0
    %1811 = vmatpush1.msra.mxu0 0.0
    %1812 = vmatprep.subr.mxu0 0.0
    %1813 = vmatpush1.msra.mxu0 0.0
    %1814 = vmatprep.subr.mxu0 0.0
    %1815 = vmatpush1.msra.mxu0 0.0
    %1816 = vmatprep.subr.mxu0 0.0
    %1817 = vmatpush1.msra.mxu0 0.0
    %1818 = vmatprep.subr.mxu0 0.0
    %1819 = vmatpush1.msra.mxu0 0.0
    %1820 = vmatprep.subr.mxu0 0.0
    %1821 = vmatpush1.msra.mxu0 0.0
    %1822 = vmatprep.subr.mxu0 0.0
    %1823 = vmatpush1.msra.mxu0 0.0
    %1824 = vmatprep.subr.mxu0 0.0
    %1825 = vmatpush1.msra.mxu0 0.0
    %1826 = vmatprep.subr.mxu0 0.0
    %1827 = vmatpush1.msra.mxu0 0.0
    %1828 = vmatprep.subr.mxu0 0.0
    %1829 = vmatpush1.msra.mxu0 0.0
    %1830 = vmatprep.subr.mxu0 0.0
    %1831 = vmatpush1.msra.mxu0 0.0
    %1832 = vmatprep.subr.mxu0 0.0
    %1833 = vmatpush1.msra.mxu0 0.0
    %1834 = vmatprep.subr.mxu0 0.0
    %1835 = vmatpush1.msra.mxu0 0.0
    %1836 = vmatprep.subr.mxu0 0.0
    %1837 = vmatpush1.msra.mxu0 0.0
    %1838 = vmatprep.subr.mxu0 0.0
    %1839 = vmatpush1.msra.mxu0 0.0
    %1840 = vmatprep.subr.mxu0 0.0
    %1841 = vmatpush1.msra.mxu0 0.0
    %1842 = vmatprep.mubr.f32.mxu0 0.0
    %1843 = vmatmul.mubr.f32.gmra.mrb[0].mxu0 %v1776
    %v1844 = vpop.f32.mrb[0].mxu0
    %v1845 = vadd.f32 0.0, %v1844
    %v1846 = vpop.f32.mrb[0].mxu0
    %1847 = vdwg.mxu0
    %v1848 = vadd.f32 %v1605, %v1845
    %1849 = vrot.lane.b32.xlu0 %v120, 80
    %v1850 = vpop.permute.xlu0 %1849
    %1851 = vrot.lane.b32.xlu0 %v120, 16
    %v1852 = vpop.permute.xlu0 %1851
    %v1853 = vsel %vm135, %v1850, 0
    %v1855 = vsel %vm135, %v1852, 0
    %1857 = vmatprep.subr.mxu0 0.0
    %1858 = vmatpush1.xpose.msra.mxu0 %v1855
    %1859 = vmatprep.subr.mxu0 0.0
    %1860 = vmatpush1.xpose.msra.mxu0 0.0
    %1861 = vmatprep.subr.mxu0 0.0
    %1862 = vmatpush1.xpose.msra.mxu0 0.0
    %1863 = vmatprep.subr.mxu0 0.0
    %1864 = vmatpush1.xpose.msra.mxu0 0.0
    %1865 = vmatprep.subr.mxu0 0.0
    %1866 = vmatpush1.xpose.msra.mxu0 0.0
    %1867 = vmatprep.subr.mxu0 0.0
    %1868 = vmatpush1.xpose.msra.mxu0 0.0
    %1869 = vmatprep.subr.mxu0 0.0
    %1870 = vmatpush1.xpose.msra.mxu0 0.0
    %1871 = vmatprep.subr.mxu0 0.0
    %1872 = vmatpush1.xpose.msra.mxu0 0.0
    %1873 = vmatprep.subr.mxu0 0.0
    %1874 = vmatpush1.xpose.msra.mxu0 0.0
    %1875 = vmatprep.subr.mxu0 0.0
    %1876 = vmatpush1.xpose.msra.mxu0 0.0
    %1877 = vmatprep.subr.mxu0 0.0
    %1878 = vmatpush1.xpose.msra.mxu0 0.0
    %1879 = vmatprep.subr.mxu0 0.0
    %1880 = vmatpush1.xpose.msra.mxu0 0.0
    %1881 = vmatprep.subr.mxu0 0.0
    %1882 = vmatpush1.xpose.msra.mxu0 0.0
    %1883 = vmatprep.subr.mxu0 0.0
    %1884 = vmatpush1.xpose.msra.mxu0 0.0
    %1885 = vmatprep.subr.mxu0 0.0
    %1886 = vmatpush1.xpose.msra.mxu0 0.0
    %1887 = vmatprep.subr.mxu0 0.0
    %1888 = vmatpush1.xpose.msra.mxu0 0.0
    %1889 = vmatprep.subr.mxu0 0.0
    %1890 = vmatpush1.xpose.msra.mxu0 0.0
    %1891 = vmatprep.subr.mxu0 0.0
    %1892 = vmatpush1.xpose.msra.mxu0 0.0
    %1893 = vmatprep.subr.mxu0 0.0
    %1894 = vmatpush1.xpose.msra.mxu0 0.0
    %1895 = vmatprep.subr.mxu0 0.0
    %1896 = vmatpush1.xpose.msra.mxu0 0.0
    %1897 = vmatprep.subr.mxu0 0.0
    %1898 = vmatpush1.xpose.msra.mxu0 0.0
    %1899 = vmatprep.subr.mxu0 0.0
    %1900 = vmatpush1.xpose.msra.mxu0 0.0
    %1901 = vmatprep.subr.mxu0 0.0
    %1902 = vmatpush1.xpose.msra.mxu0 0.0
    %1903 = vmatprep.subr.mxu0 0.0
    %1904 = vmatpush1.xpose.msra.mxu0 0.0
    %1905 = vmatprep.subr.mxu0 0.0
    %1906 = vmatpush1.xpose.msra.mxu0 0.0
    %1907 = vmatprep.subr.mxu0 0.0
    %1908 = vmatpush1.xpose.msra.mxu0 0.0
    %1909 = vmatprep.subr.mxu0 0.0
    %1910 = vmatpush1.xpose.msra.mxu0 0.0
    %1911 = vmatprep.subr.mxu0 0.0
    %1912 = vmatpush1.xpose.msra.mxu0 0.0
    %1913 = vmatprep.subr.mxu0 0.0
    %1914 = vmatpush1.xpose.msra.mxu0 0.0
    %1915 = vmatprep.subr.mxu0 0.0
    %1916 = vmatpush1.xpose.msra.mxu0 0.0
    %1917 = vmatprep.subr.mxu0 0.0
    %1918 = vmatpush1.xpose.msra.mxu0 0.0
    %1919 = vmatprep.subr.mxu0 0.0
    %1920 = vmatpush1.xpose.msra.mxu0 0.0
    %1921 = vmatprep.mubr.f32.mxu0 0.0
    %1922 = vmatmul.mubr.f32.gmra.mrb[0].mxu0 %v1853
    %v1923 = vpop.f32.mrb[0].mxu0
    %v1924 = vadd.f32 %v1130, %v1923
    %v1925 = vpop.f32.mrb[0].mxu0
    %1926 = vdwg.mxu0
    %v1927 = vsel %vm210, %v1924, -inf
    %1928 = vmax.xlane.f32.xlu0 %v1927
    %v1929 = vpop.xlane.xlu0 %1928
    %v1930 = vsub.f32 %v1924, %v1929
    %v1931 = vmul.f32 %v1930, 1.442695
    %v1932 = vpow.pop %v1931
    %v1933 = vsel %vm210, %v1932, 0.0
    %1934 = vadd.xlane.f32.xlu0 %v1933
    %v1935 = vpop.xlane.xlu0 %1934
    %v1936 = vrcp.pop %v1935
    %v1937 = vmul.f32 %v1932, %v1936
    %1938 = vrot.lane.b32.xlu0 %v122, 80
    %v1939 = vpop.permute.xlu0 %1938
    %v1942 = vsel %vm210, %v1937, 0
    %1944 = vmatprep.subr.mxu0 0.0
    %1945 = vmatpush1.msra.mxu0 %v1939
    %1946 = vmatprep.subr.mxu0 0.0
    %1947 = vmatpush1.msra.mxu0 0.0
    %1948 = vmatprep.subr.mxu0 0.0
    %1949 = vmatpush1.msra.mxu0 0.0
    %1950 = vmatprep.subr.mxu0 0.0
    %1951 = vmatpush1.msra.mxu0 0.0
    %1952 = vmatprep.subr.mxu0 0.0
    %1953 = vmatpush1.msra.mxu0 0.0
    %1954 = vmatprep.subr.mxu0 0.0
    %1955 = vmatpush1.msra.mxu0 0.0
    %1956 = vmatprep.subr.mxu0 0.0
    %1957 = vmatpush1.msra.mxu0 0.0
    %1958 = vmatprep.subr.mxu0 0.0
    %1959 = vmatpush1.msra.mxu0 0.0
    %1960 = vmatprep.subr.mxu0 0.0
    %1961 = vmatpush1.msra.mxu0 0.0
    %1962 = vmatprep.subr.mxu0 0.0
    %1963 = vmatpush1.msra.mxu0 0.0
    %1964 = vmatprep.subr.mxu0 0.0
    %1965 = vmatpush1.msra.mxu0 0.0
    %1966 = vmatprep.subr.mxu0 0.0
    %1967 = vmatpush1.msra.mxu0 0.0
    %1968 = vmatprep.subr.mxu0 0.0
    %1969 = vmatpush1.msra.mxu0 0.0
    %1970 = vmatprep.subr.mxu0 0.0
    %1971 = vmatpush1.msra.mxu0 0.0
    %1972 = vmatprep.subr.mxu0 0.0
    %1973 = vmatpush1.msra.mxu0 0.0
    %1974 = vmatprep.subr.mxu0 0.0
    %1975 = vmatpush1.msra.mxu0 0.0
    %1976 = vmatprep.subr.mxu0 0.0
    %1977 = vmatpush1.msra.mxu0 0.0
    %1978 = vmatprep.subr.mxu0 0.0
    %1979 = vmatpush1.msra.mxu0 0.0
    %1980 = vmatprep.subr.mxu0 0.0
    %1981 = vmatpush1.msra.mxu0 0.0
    %1982 = vmatprep.subr.mxu0 0.0
    %1983 = vmatpush1.msra.mxu0 0.0
    %1984 = vmatprep.subr.mxu0 0.0
    %1985 = vmatpush1.msra.mxu0 0.0
    %1986 = vmatprep.subr.mxu0 0.0
    %1987 = vmatpush1.msra.mxu0 0.0
    %1988 = vmatprep.subr.mxu0 0.0
    %1989 = vmatpush1.msra.mxu0 0.0
    %1990 = vmatprep.subr.mxu0 0.0
    %1991 = vmatpush1.msra.mxu0 0.0
    %1992 = vmatprep.subr.mxu0 0.0
    %1993 = vmatpush1.msra.mxu0 0.0
    %1994 = vmatprep.subr.mxu0 0.0
    %1995 = vmatpush1.msra.mxu0 0.0
    %1996 = vmatprep.subr.mxu0 0.0
    %1997 = vmatpush1.msra.mxu0 0.0
    %1998 = vmatprep.subr.mxu0 0.0
    %1999 = vmatpush1.msra.mxu0 0.0
    %2000 = vmatprep.subr.mxu0 0.0
    %2001 = vmatpush1.msra.mxu0 0.0
    %2002 = vmatprep.subr.mxu0 0.0
    %2003 = vmatpush1.msra.mxu0 0.0
    %2004 = vmatprep.subr.mxu0 0.0
    %2005 = vmatpush1.msra.mxu0 0.0
    %2006 = vmatprep.subr.mxu0 0.0
    %2007 = vmatpush1.msra.mxu0 0.0
    %2008 = vmatprep.mubr.f32.mxu0 0.0
    %2009 = vmatmul.mubr.f32.gmra.mrb[0].mxu0 %v1942
    %v2010 = vpop.f32.mrb[0].mxu0
    %v2011 = vadd.f32 0.0, %v2010
    %v2012 = vpop.f32.mrb[0].mxu0
    %2013 = vdwg.mxu0
    %v2014 = vld [vmem:[%s3 + $0x30] sm:$0xff]
    %v2015 = vld [vmem:[%s3 + $0x38] sm:$0xff]
    %v2017 = vsel %vm135, %v2011, 0
    %2019 = vmatprep.subr.mxu0 0.0
    %2020 = vmatpush1.msra.mxu0 %v2014
    %2021 = vmatprep.subr.mxu0 0.0
    %2022 = vmatpush1.msra.mxu0 %v2015
    %2023 = vmatprep.subr.mxu0 0.0
    %2024 = vmatpush1.msra.mxu0 0.0
    %2025 = vmatprep.subr.mxu0 0.0
    %2026 = vmatpush1.msra.mxu0 0.0
    %2027 = vmatprep.subr.mxu0 0.0
    %2028 = vmatpush1.msra.mxu0 0.0
    %2029 = vmatprep.subr.mxu0 0.0
    %2030 = vmatpush1.msra.mxu0 0.0
    %2031 = vmatprep.subr.mxu0 0.0
    %2032 = vmatpush1.msra.mxu0 0.0
    %2033 = vmatprep.subr.mxu0 0.0
    %2034 = vmatpush1.msra.mxu0 0.0
    %2035 = vmatprep.subr.mxu0 0.0
    %2036 = vmatpush1.msra.mxu0 0.0
    %2037 = vmatprep.subr.mxu0 0.0
    %2038 = vmatpush1.msra.mxu0 0.0
    %2039 = vmatprep.subr.mxu0 0.0
    %2040 = vmatpush1.msra.mxu0 0.0
    %2041 = vmatprep.subr.mxu0 0.0
    %2042 = vmatpush1.msra.mxu0 0.0
    %2043 = vmatprep.subr.mxu0 0.0
    %2044 = vmatpush1.msra.mxu0 0.0
    %2045 = vmatprep.subr.mxu0 0.0
    %2046 = vmatpush1.msra.mxu0 0.0
    %2047 = vmatprep.subr.mxu0 0.0
    %2048 = vmatpush1.msra.mxu0 0.0
    %2049 = vmatprep.subr.mxu0 0.0
    %2050 = vmatpush1.msra.mxu0 0.0
    %2051 = vmatprep.subr.mxu0 0.0
    %2052 = vmatpush1.msra.mxu0 0.0
    %2053 = vmatprep.subr.mxu0 0.0
    %2054 = vmatpush1.msra.mxu0 0.0
    %2055 = vmatprep.subr.mxu0 0.0
    %2056 = vmatpush1.msra.mxu0 0.0
    %2057 = vmatprep.subr.mxu0 0.0
    %2058 = vmatpush1.msra.mxu0 0.0
    %2059 = vmatprep.subr.mxu0 0.0
    %2060 = vmatpush1.msra.mxu0 0.0
    %2061 = vmatprep.subr.mxu0 0.0
    %2062 = vmatpush1.msra.mxu0 0.0
    %2063 = vmatprep.subr.mxu0 0.0
    %2064 = vmatpush1.msra.mxu0 0.0
    %2065 = vmatprep.subr.mxu0 0.0
    %2066 = vmatpush1.msra.mxu0 0.0
    %2067 = vmatprep.subr.mxu0 0.0
    %2068 = vmatpush1.msra.mxu0 0.0
    %2069 = vmatprep.subr.mxu0 0.0
    %2070 = vmatpush1.msra.mxu0 0.0
    %2071 = vmatprep.subr.mxu0 0.0
    %2072 = vmatpush1.msra.mxu0 0.0
    %2073 = vmatprep.subr.mxu0 0.0
    %2074 = vmatpush1.msra.mxu0 0.0
    %2075 = vmatprep.subr.mxu0 0.0
    %2076 = vmatpush1.msra.mxu0 0.0
    %2077 = vmatprep.subr.mxu0 0.0
    %2078 = vmatpush1.msra.mxu0 0.0
    %2079 = vmatprep.subr.mxu0 0.0
    %2080 = vmatpush1.msra.mxu0 0.0
    %2081 = vmatprep.subr.mxu0 0.0
    %2082 = vmatpush1.msra.mxu0 0.0
    %2083 = vmatprep.mubr.f32.mxu0 0.0
    %2084 = vmatmul.mubr.f32.gmra.mrb[0].mxu0 %v2017
    %v2085 = vpop.f32.mrb[0].mxu0
    %v2086 = vadd.f32 0.0, %v2085
    %v2087 = vpop.f32.mrb[0].mxu0
    %2088 = vdwg.mxu0
    %v2089 = vadd.f32 %v1848, %v2086
    %v2090 = vadd.f32 %v2089, %v1096
    %v2091 = vsel %vm1098, %v2090, 0.0
    %2092 = vadd.xlane.f32.xlu0 %v2091
    %v2093 = vpop.xlane.xlu0 %2092
    %v2094 = vmul.f32 %v2093, %v1102
    %v2095 = vmul.f32 %v2090, %v2090
    %v2096 = vsel %vm1098, %v2095, 0.0
    %2097 = vadd.xlane.f32.xlu0 %v2096
    %v2098 = vpop.xlane.xlu0 %2097
    %v2099 = vmul.f32 %v2098, %v1102
    %v2100 = vmul.f32 %v2094, %v2094
    %v2101 = vsub.f32 %v2099, %v2100
    %v2102 = vsub.f32 %v2090, %v2094
    %v2103 = vadd.f32 %v2101, 1e-05
    %v2104 = vrsqrt.pop %v2103
    %v2105 = vmul.f32 %v2102, %v2104
    %v2106 = vmul.f32 %v2105, %v1118
    %v2107 = vadd.f32 %v2106, %v1123
    %2108 = vst.msk [vmem:[#allocation2 + $0x8] sm:$0xff] %vm1098, %v2107
    // Predicated region
    $region22: #{tpu_custom_call.1} parent=1 // pred_check
      _
    $region23: #{tpu_custom_call.1} parent=1 // pred_check_branch
      %2110 = sbr.rel (0) target = $region25
    $region24: #{tpu_custom_call.1} parent=1 // pred_region
      %s2112 = ssub.s32 256, 256
      %2113 = vsyncadd [#allocation3], %s2112
      %s2114 = sshll.u32 [#allocation2], 4
      %s2115 = int_to_ptr.vmem [resolvable:$true] %s2114
      %2120 = dma.vmem_to_hbm [thread:$0]  %s2115, 256, %s5, [#allocation3], 128, 128, 8
    $region25: #{tpu_custom_call.1} parent=1 // pred_fallthru
      _
    // Predicated region
    $region26: #{tpu_custom_call.1} parent=1 // pred_check
      _
    $region27: #{tpu_custom_call.1} parent=1 // pred_check_branch
      %2122 = sbr.rel (0) target = $region29
    $region28: #{tpu_custom_call.1} parent=1 // pred_region
      %2123 = dma.done [#allocation3], 256
    $region29: #{tpu_custom_call.1} parent=1 // pred_fallthru
      _
    %2124 = vsyncpa [#allocation3], 1

</llo_original>
